<compile_context>
chip_gen: v5e
topology: v5e:2x2
jax: 0.10.0
libtpu: 0.0.40
codegen_flags: <defaults>
</compile_context>

<pallas_src>
import functools

import jax
import jax.numpy as jnp
from jax.experimental import pallas as pl
from jax.experimental.pallas import tpu as pltpu

D_MODEL = 32
N_HEADS = 4
D_FF = 64
EPS = 1e-5          # nn.LayerNorm default
LANES = 128

# --- packed-parameter slab layout (row offsets) ------------------------------
# Weight slab (bf16, (W_ROWS, 128)): matmul weights in (in, out) layout, each
# block starting at a sublane-aligned row, occupying columns [0, width).
R_WQKV_S = 0                     # (D, 3D)  [Wq/sqrt(dh) | Wk | Wv]  self-attn
R_WQKV_C = R_WQKV_S + D_MODEL    # (D, 3D)                           cross-attn
R_WO_S   = R_WQKV_C + D_MODEL    # (D, D)   self-attn output projection
R_WO_C   = R_WO_S + D_MODEL      # (D, D)   cross-attn output projection
R_W1     = R_WO_C + D_MODEL      # (D, Dff) FFN linear1
R_W2     = R_W1 + D_MODEL        # (Dff, D) FFN linear2
W_ROWS   = R_W2 + D_FF           # = 224 rows

# Vector slab (f32, (V_ROWS, 128)): biases + LayerNorm params, one per row.
V_BQKV_S, V_BQKV_C = 0, 1        # (3D,)  [bq/sqrt(dh) | bk | bv]
V_BO_S, V_BO_C     = 2, 3        # (D,)
V_B1, V_B2         = 4, 5        # (Dff,), (D,)
V_GAMMA            = 6           # rows 6..8  : LayerNorm 1..3 gamma (D,)
V_BETA             = 9           # rows 9..11 : LayerNorm 1..3 beta  (D,)
V_ROWS             = 16


# ----------------------------------------------------------------------------
# Fused kernel: (self-attn + add&LN1) -> (cross-attn + add&LN2) -> (FFN + add&LN3)
# Single invocation, batch folded into the row axis, weights resident in VMEM.
# ----------------------------------------------------------------------------
def decoder_layer_kernel(tgt_ref, mem_ref, w_ref, v_ref, out_ref, *,
                         batch, n_heads):
    D, Dff = D_MODEL, D_FF
    dh = D // n_heads
    St = tgt_ref.shape[0] // batch
    Sm = mem_ref.shape[0] // batch

    x = tgt_ref[...]                       # (B*St, D) f32
    mem = mem_ref[...]                     # (B*Sm, D) f32

    def wrows(row, rows):                  # aligned, full-width bf16 weight rows
        return w_ref[row:row + rows, :]

    def vrow(row, col, n):                 # (1, n) f32 param slice (broadcasts)
        return v_ref[row:row + 1, :][:, col:col + n]

    def mm(a, w):                          # bf16 MXU operands, f32 accumulation
        return jnp.dot(a.astype(jnp.bfloat16), w.astype(jnp.bfloat16),
                       preferred_element_type=jnp.float32)

    def layernorm(y, i):                   # elementwise math kept in f32
        mu = jnp.mean(y, axis=-1, keepdims=True)
        var = jnp.mean((y - mu) ** 2, axis=-1, keepdims=True)
        return ((y - mu) * jax.lax.rsqrt(var + EPS)
                * vrow(V_GAMMA + i, 0, D) + vrow(V_BETA + i, 0, D))

    def attention(q2d, k2d, v2d, sq, sk, wo_row, bo_row):
        # q2d:(B*sq, D), k2d/v2d:(B*sk, D).  Head h lives in lanes
        # [h*dh, (h+1)*dh); the 1/sqrt(dh) scale is folded into Wq / bq.
        q = q2d.reshape(batch, sq, D).astype(jnp.bfloat16)
        k = k2d.reshape(batch, sk, D).astype(jnp.bfloat16)
        v = v2d.reshape(batch, sk, D).astype(jnp.bfloat16)
        heads = []
        for h in range(n_heads):
            sl = slice(h * dh, (h + 1) * dh)
            s = jnp.einsum('bqf,bkf->bqk', q[:, :, sl], k[:, :, sl],
                           preferred_element_type=jnp.float32)
            s = s - jnp.max(s, axis=-1, keepdims=True)
            p = jnp.exp(s)
            p = p * pl.reciprocal(jnp.sum(p, axis=-1, keepdims=True), approx=True)
            heads.append(jnp.einsum('bqk,bkf->bqf', p.astype(jnp.bfloat16),
                                    v[:, :, sl],
                                    preferred_element_type=jnp.float32))
        # Heads contiguous along lanes -> one (B*sq, D) @ (D, D) out-projection.
        o = jnp.concatenate(heads, axis=-1).reshape(batch * sq, D)
        return mm(o, wrows(wo_row, D)[:, 0:D]) + vrow(bo_row, 0, D)

    # ---- self-attention + add & LayerNorm 1 (dropout = identity) ----
    qkv = mm(x, wrows(R_WQKV_S, D)[:, 0:3 * D]) + vrow(V_BQKV_S, 0, 3 * D)
    a = attention(qkv[:, 0:D], qkv[:, D:2 * D], qkv[:, 2 * D:3 * D],
                  St, St, R_WO_S, V_BO_S)
    x = layernorm(x + a, 0)

    # ---- cross-attention + add & LayerNorm 2 ----
    wqkv_c = wrows(R_WQKV_C, D)
    q_c = mm(x, wqkv_c[:, 0:D]) + vrow(V_BQKV_C, 0, D)
    kv_c = mm(mem, wqkv_c[:, D:3 * D]) + vrow(V_BQKV_C, D, 2 * D)
    a = attention(q_c, kv_c[:, 0:D], kv_c[:, D:2 * D],
                  St, Sm, R_WO_C, V_BO_C)
    x = layernorm(x + a, 1)

    # ---- feed-forward (Linear -> ReLU -> Linear) + add & LayerNorm 3 ----
    hdn = jnp.maximum(mm(x, wrows(R_W1, D)[:, 0:Dff]) + vrow(V_B1, 0, Dff), 0.0)
    y = mm(hdn, wrows(R_W2, Dff)[:, 0:D]) + vrow(V_B2, 0, D)
    x = layernorm(x + y, 2)

    out_ref[...] = x.astype(out_ref.dtype)


# ----------------------------------------------------------------------------
# Wrapper: one gridless pallas_call, everything resident in VMEM.
# ----------------------------------------------------------------------------
@jax.jit
def decoder_layer(tgt, memory, w_slab, v_slab):
    B, St, D = tgt.shape
    _, Sm, _ = memory.shape
    kernel = functools.partial(decoder_layer_kernel, batch=B, n_heads=N_HEADS)
    vmem = pl.BlockSpec(memory_space=pltpu.MemorySpace.VMEM)   # whole array
    out = pl.pallas_call(
        kernel,
        out_shape=jax.ShapeDtypeStruct((B * St, D), tgt.dtype),
        in_specs=[vmem, vmem, vmem, vmem],
        out_specs=vmem,
    )(tgt.reshape(B * St, D), memory.reshape(B * Sm, D), w_slab, v_slab)
    return out.reshape(B, St, D)


# ----------------------------------------------------------------------------
# Synthetic parameters (natural (in, out) layout) + slab packing.
# ----------------------------------------------------------------------------
def make_params(key):
    """Weights are rounded through bf16 so the bf16 weight slab is lossless."""
    ks = jax.random.split(key, 22)
    s = 0.05

    def lin(kw, kb, din, dout):
        w = jax.random.normal(kw, (din, dout), jnp.float32) * s
        w = w.astype(jnp.bfloat16).astype(jnp.float32)
        b = jax.random.normal(kb, (dout,), jnp.float32) * s
        return w, b

    wq_s, bq_s = lin(ks[0], ks[1], D_MODEL, D_MODEL)
    wk_s, bk_s = lin(ks[2], ks[3], D_MODEL, D_MODEL)
    wv_s, bv_s = lin(ks[4], ks[5], D_MODEL, D_MODEL)
    wo_s, bo_s = lin(ks[6], ks[7], D_MODEL, D_MODEL)
    wq_c, bq_c = lin(ks[8], ks[9], D_MODEL, D_MODEL)
    wk_c, bk_c = lin(ks[10], ks[11], D_MODEL, D_MODEL)
    wv_c, bv_c = lin(ks[12], ks[13], D_MODEL, D_MODEL)
    wo_c, bo_c = lin(ks[14], ks[15], D_MODEL, D_MODEL)
    w1, b1 = lin(ks[16], ks[17], D_MODEL, D_FF)
    w2, b2 = lin(ks[18], ks[19], D_FF, D_MODEL)
    gamma = 1.0 + 0.1 * jax.random.normal(ks[20], (3, D_MODEL), jnp.float32)
    beta = 0.1 * jax.random.normal(ks[21], (3, D_MODEL), jnp.float32)
    return {
        "self_attn": (wq_s, wk_s, wv_s, bq_s, bk_s, bv_s, wo_s, bo_s),
        "cross_attn": (wq_c, wk_c, wv_c, bq_c, bk_c, bv_c, wo_c, bo_c),
        "ffn": (w1, b1, w2, b2),
        "ln": (gamma, beta),
    }


def pack_params(params):
    """Pack all parameters into two lane-dense slabs (bf16 weights, f32 vecs)."""
    d, dff = D_MODEL, D_FF
    scale = 1.0 / (d // N_HEADS) ** 0.5        # folded into Wq / bq
    wq_s, wk_s, wv_s, bq_s, bk_s, bv_s, wo_s, bo_s = params["self_attn"]
    wq_c, wk_c, wv_c, bq_c, bk_c, bv_c, wo_c, bo_c = params["cross_attn"]
    w1, b1, w2, b2 = params["ffn"]
    gamma, beta = params["ln"]

    w = jnp.zeros((W_ROWS, LANES), jnp.float32)
    w = w.at[R_WQKV_S:R_WQKV_S + d, 0:3 * d].set(
        jnp.concatenate([wq_s * scale, wk_s, wv_s], axis=1))
    w = w.at[R_WQKV_C:R_WQKV_C + d, 0:3 * d].set(
        jnp.concatenate([wq_c * scale, wk_c, wv_c], axis=1))
    w = w.at[R_WO_S:R_WO_S + d, 0:d].set(wo_s)
    w = w.at[R_WO_C:R_WO_C + d, 0:d].set(wo_c)
    w = w.at[R_W1:R_W1 + d, 0:dff].set(w1)
    w = w.at[R_W2:R_W2 + dff, 0:d].set(w2)

    v = jnp.zeros((V_ROWS, LANES), jnp.float32)
    v = v.at[V_BQKV_S, 0:3 * d].set(jnp.concatenate([bq_s * scale, bk_s, bv_s]))
    v = v.at[V_BQKV_C, 0:3 * d].set(jnp.concatenate([bq_c * scale, bk_c, bv_c]))
    v = v.at[V_BO_S, 0:d].set(bo_s)
    v = v.at[V_BO_C, 0:d].set(bo_c)
    v = v.at[V_B1, 0:dff].set(b1)
    v = v.at[V_B2, 0:d].set(b2)
    v = v.at[V_GAMMA:V_GAMMA + 3, 0:d].set(gamma)
    v = v.at[V_BETA:V_BETA + 3, 0:d].set(beta)

    return w.astype(jnp.bfloat16), v


# ----------------------------------------------------------------------------
# Pure-jnp f32 reference (exact softmax / division) for the correctness check.
# ----------------------------------------------------------------------------
def decoder_layer_reference(tgt, memory, params):
    H, dh = N_HEADS, D_MODEL // N_HEADS

    def mha(xq, xkv, p):
        wq, wk, wv, bq, bk, bv, wo, bo = p
        B, Sq, D = xq.shape
        Sk = xkv.shape[1]
        q = (xq @ wq + bq).reshape(B, Sq, H, dh).transpose(0, 2, 1, 3)
        k = (xkv @ wk + bk).reshape(B, Sk, H, dh).transpose(0, 2, 1, 3)
        v = (xkv @ wv + bv).reshape(B, Sk, H, dh).transpose(0, 2, 1, 3)
        s = jnp.einsum('bhqf,bhkf->bhqk', q, k) / (dh ** 0.5)
        pr = jax.nn.softmax(s, axis=-1)
        o = jnp.einsum('bhqk,bhkf->bhqf', pr, v)
        return o.transpose(0, 2, 1, 3).reshape(B, Sq, D) @ wo + bo

    gamma, beta = params["ln"]

    def ln(x, i):
        mu = jnp.mean(x, axis=-1, keepdims=True)
        var = jnp.mean((x - mu) ** 2, axis=-1, keepdims=True)
        return (x - mu) / jnp.sqrt(var + EPS) * gamma[i] + beta[i]

    x = ln(tgt + mha(tgt, tgt, params["self_attn"]), 0)
    x = ln(x + mha(x, memory, params["cross_attn"]), 1)
    w1, b1, w2, b2 = params["ffn"]
    h = jnp.maximum(x @ w1 + b1, 0.0)
    return ln(x + h @ w2 + b2, 2)


if __name__ == "__main__":
    B, S_TGT, S_MEM = 2, 8, 8
    key = jax.random.PRNGKey(0)
    k_tgt, k_mem, k_par = jax.random.split(key, 3)

    tgt = jax.random.normal(k_tgt, (B, S_TGT, D_MODEL), jnp.float32)
    memory = jax.random.normal(k_mem, (B, S_MEM, D_MODEL), jnp.float32)
    params = make_params(k_par)
    w_slab, v_slab = pack_params(params)

    out = jax.block_until_ready(decoder_layer(tgt, memory, w_slab, v_slab))
    ref = decoder_layer_reference(tgt, memory, params)

    assert out.shape == (B, S_TGT, D_MODEL)
    assert bool(jnp.all(jnp.isfinite(out)))
    max_err = float(jnp.max(jnp.abs(out - ref)))
    assert jnp.allclose(out, ref, atol=1e-2, rtol=1e-2), max_err
    print("KERNEL_OK")
</pallas_src>

<mosaic_0001>
module attributes {stable_mosaic.version = 11 : i64} {
  func.func @decoder_layer_kernel(%arg0: memref<16x32xf32, #tpu.memory_space<vmem>>, %arg1: memref<16x32xf32, #tpu.memory_space<vmem>>, %arg2: memref<224x128xbf16, #tpu.memory_space<vmem>>, %arg3: memref<16x128xf32, #tpu.memory_space<vmem>>, %arg4: memref<16x32xf32, #tpu.memory_space<vmem>>) attributes {dimension_semantics = [], scalar_prefetch = 0 : i64, scratch_operands = 0 : i64, tpu.core_type = #tpu.core_type<tc>} {
    %c0 = arith.constant 0 : index
    %c0_0 = arith.constant 0 : index
    %0 = vector.load %arg0[%c0, %c0_0] : memref<16x32xf32, #tpu.memory_space<vmem>>, vector<16x32xf32>
    %c0_1 = arith.constant 0 : index
    %c0_2 = arith.constant 0 : index
    %1 = vector.load %arg1[%c0_1, %c0_2] : memref<16x32xf32, #tpu.memory_space<vmem>>, vector<16x32xf32>
    %c0_3 = arith.constant 0 : index
    %c0_4 = arith.constant 0 : index
    %2 = vector.load %arg2[%c0_3, %c0_4] : memref<224x128xbf16, #tpu.memory_space<vmem>>, vector<32x128xbf16>
    %3 = vector.extract_strided_slice %2 {offsets = [0, 0], sizes = [32, 96], strides = [1, 1]} : vector<32x128xbf16> to vector<32x96xbf16>
    %4 = arith.truncf %0 : vector<16x32xf32> to vector<16x32xbf16>
    %cst = arith.constant dense<0.000000e+00> : vector<16x96xf32>
    %5 = tpu.matmul %4, %3, %cst {dimension_numbers = #tpu.dot_dimension_numbers<[1], [0], [0], [1], [0, 0, 1, 1], [], []>} : vector<16x32xbf16>, vector<32x96xbf16>, vector<16x96xf32> -> vector<16x96xf32>
    %c0_5 = arith.constant 0 : index
    %c0_6 = arith.constant 0 : index
    %6 = vector.load %arg3[%c0_5, %c0_6] : memref<16x128xf32, #tpu.memory_space<vmem>>, vector<1x128xf32>
    %7 = vector.extract_strided_slice %6 {offsets = [0, 0], sizes = [1, 96], strides = [1, 1]} : vector<1x128xf32> to vector<1x96xf32>
    %8 = vector.broadcast %7 : vector<1x96xf32> to vector<16x96xf32>
    %9 = arith.addf %5, %8 : vector<16x96xf32>
    %10 = vector.extract_strided_slice %9 {offsets = [0, 0], sizes = [16, 32], strides = [1, 1]} : vector<16x96xf32> to vector<16x32xf32>
    %11 = vector.extract_strided_slice %9 {offsets = [0, 32], sizes = [16, 32], strides = [1, 1]} : vector<16x96xf32> to vector<16x32xf32>
    %12 = vector.extract_strided_slice %9 {offsets = [0, 64], sizes = [16, 32], strides = [1, 1]} : vector<16x96xf32> to vector<16x32xf32>
    %13 = vector.shape_cast %10 : vector<16x32xf32> to vector<2x8x32xf32>
    %14 = arith.truncf %13 : vector<2x8x32xf32> to vector<2x8x32xbf16>
    %15 = vector.shape_cast %11 : vector<16x32xf32> to vector<2x8x32xf32>
    %16 = arith.truncf %15 : vector<2x8x32xf32> to vector<2x8x32xbf16>
    %17 = vector.shape_cast %12 : vector<16x32xf32> to vector<2x8x32xf32>
    %18 = arith.truncf %17 : vector<2x8x32xf32> to vector<2x8x32xbf16>
    %19 = vector.extract_strided_slice %14 {offsets = [0, 0, 0], sizes = [2, 8, 8], strides = [1, 1, 1]} : vector<2x8x32xbf16> to vector<2x8x8xbf16>
    %20 = vector.extract_strided_slice %16 {offsets = [0, 0, 0], sizes = [2, 8, 8], strides = [1, 1, 1]} : vector<2x8x32xbf16> to vector<2x8x8xbf16>
    "tpu.trace_start"() <{level = 10 : i32, message = "bqf,bkf->bqk"}> : () -> ()
    %cst_7 = arith.constant dense<0.000000e+00> : vector<2x8x8xf32>
    %21 = tpu.matmul %19, %20, %cst_7 {dimension_numbers = #tpu.dot_dimension_numbers<[2], [2], [1], [1], [0, 0, 0, 1, 1, 1], [0], [0]>} : vector<2x8x8xbf16>, vector<2x8x8xbf16>, vector<2x8x8xf32> -> vector<2x8x8xf32>
    "tpu.trace_stop"() : () -> ()
    %cst_8 = arith.constant dense<0xFF800000> : vector<2x8xf32>
    %22 = vector.multi_reduction <maximumf>, %21, %cst_8 [2] : vector<2x8x8xf32> to vector<2x8xf32>
    %23 = vector.shape_cast %22 : vector<2x8xf32> to vector<2x8x1xf32>
    %24 = vector.broadcast %23 : vector<2x8x1xf32> to vector<2x8x8xf32>
    %25 = arith.subf %21, %24 : vector<2x8x8xf32>
    %26 = math.exp %25 : vector<2x8x8xf32>
    %cst_9 = arith.constant dense<0.000000e+00> : vector<2x8xf32>
    %27 = vector.multi_reduction <add>, %26, %cst_9 [2] : vector<2x8x8xf32> to vector<2x8xf32>
    %28 = vector.shape_cast %27 : vector<2x8xf32> to vector<2x8x1xf32>
    %29 = tpu.reciprocal %28 {approx = true} : vector<2x8x1xf32> -> vector<2x8x1xf32>
    %30 = vector.broadcast %29 : vector<2x8x1xf32> to vector<2x8x8xf32>
    %31 = arith.mulf %26, %30 : vector<2x8x8xf32>
    %32 = arith.truncf %31 : vector<2x8x8xf32> to vector<2x8x8xbf16>
    %33 = vector.extract_strided_slice %18 {offsets = [0, 0, 0], sizes = [2, 8, 8], strides = [1, 1, 1]} : vector<2x8x32xbf16> to vector<2x8x8xbf16>
    "tpu.trace_start"() <{level = 10 : i32, message = "bqk,bkf->bqf"}> : () -> ()
    %cst_10 = arith.constant dense<0.000000e+00> : vector<2x8x8xf32>
    %34 = tpu.matmul %32, %33, %cst_10 {dimension_numbers = #tpu.dot_dimension_numbers<[2], [1], [1], [2], [0, 0, 0, 1, 1, 2], [0], [0]>} : vector<2x8x8xbf16>, vector<2x8x8xbf16>, vector<2x8x8xf32> -> vector<2x8x8xf32>
    "tpu.trace_stop"() : () -> ()
    %35 = vector.extract_strided_slice %14 {offsets = [0, 0, 8], sizes = [2, 8, 8], strides = [1, 1, 1]} : vector<2x8x32xbf16> to vector<2x8x8xbf16>
    %36 = vector.extract_strided_slice %16 {offsets = [0, 0, 8], sizes = [2, 8, 8], strides = [1, 1, 1]} : vector<2x8x32xbf16> to vector<2x8x8xbf16>
    "tpu.trace_start"() <{level = 10 : i32, message = "bqf,bkf->bqk"}> : () -> ()
    %cst_11 = arith.constant dense<0.000000e+00> : vector<2x8x8xf32>
    %37 = tpu.matmul %35, %36, %cst_11 {dimension_numbers = #tpu.dot_dimension_numbers<[2], [2], [1], [1], [0, 0, 0, 1, 1, 1], [0], [0]>} : vector<2x8x8xbf16>, vector<2x8x8xbf16>, vector<2x8x8xf32> -> vector<2x8x8xf32>
    "tpu.trace_stop"() : () -> ()
    %cst_12 = arith.constant dense<0xFF800000> : vector<2x8xf32>
    %38 = vector.multi_reduction <maximumf>, %37, %cst_12 [2] : vector<2x8x8xf32> to vector<2x8xf32>
    %39 = vector.shape_cast %38 : vector<2x8xf32> to vector<2x8x1xf32>
    %40 = vector.broadcast %39 : vector<2x8x1xf32> to vector<2x8x8xf32>
    %41 = arith.subf %37, %40 : vector<2x8x8xf32>
    %42 = math.exp %41 : vector<2x8x8xf32>
    %cst_13 = arith.constant dense<0.000000e+00> : vector<2x8xf32>
    %43 = vector.multi_reduction <add>, %42, %cst_13 [2] : vector<2x8x8xf32> to vector<2x8xf32>
    %44 = vector.shape_cast %43 : vector<2x8xf32> to vector<2x8x1xf32>
    %45 = tpu.reciprocal %44 {approx = true} : vector<2x8x1xf32> -> vector<2x8x1xf32>
    %46 = vector.broadcast %45 : vector<2x8x1xf32> to vector<2x8x8xf32>
    %47 = arith.mulf %42, %46 : vector<2x8x8xf32>
    %48 = arith.truncf %47 : vector<2x8x8xf32> to vector<2x8x8xbf16>
    %49 = vector.extract_strided_slice %18 {offsets = [0, 0, 8], sizes = [2, 8, 8], strides = [1, 1, 1]} : vector<2x8x32xbf16> to vector<2x8x8xbf16>
    "tpu.trace_start"() <{level = 10 : i32, message = "bqk,bkf->bqf"}> : () -> ()
    %cst_14 = arith.constant dense<0.000000e+00> : vector<2x8x8xf32>
    %50 = tpu.matmul %48, %49, %cst_14 {dimension_numbers = #tpu.dot_dimension_numbers<[2], [1], [1], [2], [0, 0, 0, 1, 1, 2], [0], [0]>} : vector<2x8x8xbf16>, vector<2x8x8xbf16>, vector<2x8x8xf32> -> vector<2x8x8xf32>
    "tpu.trace_stop"() : () -> ()
    %51 = vector.extract_strided_slice %14 {offsets = [0, 0, 16], sizes = [2, 8, 8], strides = [1, 1, 1]} : vector<2x8x32xbf16> to vector<2x8x8xbf16>
    %52 = vector.extract_strided_slice %16 {offsets = [0, 0, 16], sizes = [2, 8, 8], strides = [1, 1, 1]} : vector<2x8x32xbf16> to vector<2x8x8xbf16>
    "tpu.trace_start"() <{level = 10 : i32, message = "bqf,bkf->bqk"}> : () -> ()
    %cst_15 = arith.constant dense<0.000000e+00> : vector<2x8x8xf32>
    %53 = tpu.matmul %51, %52, %cst_15 {dimension_numbers = #tpu.dot_dimension_numbers<[2], [2], [1], [1], [0, 0, 0, 1, 1, 1], [0], [0]>} : vector<2x8x8xbf16>, vector<2x8x8xbf16>, vector<2x8x8xf32> -> vector<2x8x8xf32>
    "tpu.trace_stop"() : () -> ()
    %cst_16 = arith.constant dense<0xFF800000> : vector<2x8xf32>
    %54 = vector.multi_reduction <maximumf>, %53, %cst_16 [2] : vector<2x8x8xf32> to vector<2x8xf32>
    %55 = vector.shape_cast %54 : vector<2x8xf32> to vector<2x8x1xf32>
    %56 = vector.broadcast %55 : vector<2x8x1xf32> to vector<2x8x8xf32>
    %57 = arith.subf %53, %56 : vector<2x8x8xf32>
    %58 = math.exp %57 : vector<2x8x8xf32>
    %cst_17 = arith.constant dense<0.000000e+00> : vector<2x8xf32>
    %59 = vector.multi_reduction <add>, %58, %cst_17 [2] : vector<2x8x8xf32> to vector<2x8xf32>
    %60 = vector.shape_cast %59 : vector<2x8xf32> to vector<2x8x1xf32>
    %61 = tpu.reciprocal %60 {approx = true} : vector<2x8x1xf32> -> vector<2x8x1xf32>
    %62 = vector.broadcast %61 : vector<2x8x1xf32> to vector<2x8x8xf32>
    %63 = arith.mulf %58, %62 : vector<2x8x8xf32>
    %64 = arith.truncf %63 : vector<2x8x8xf32> to vector<2x8x8xbf16>
    %65 = vector.extract_strided_slice %18 {offsets = [0, 0, 16], sizes = [2, 8, 8], strides = [1, 1, 1]} : vector<2x8x32xbf16> to vector<2x8x8xbf16>
    "tpu.trace_start"() <{level = 10 : i32, message = "bqk,bkf->bqf"}> : () -> ()
    %cst_18 = arith.constant dense<0.000000e+00> : vector<2x8x8xf32>
    %66 = tpu.matmul %64, %65, %cst_18 {dimension_numbers = #tpu.dot_dimension_numbers<[2], [1], [1], [2], [0, 0, 0, 1, 1, 2], [0], [0]>} : vector<2x8x8xbf16>, vector<2x8x8xbf16>, vector<2x8x8xf32> -> vector<2x8x8xf32>
    "tpu.trace_stop"() : () -> ()
    %67 = vector.extract_strided_slice %14 {offsets = [0, 0, 24], sizes = [2, 8, 8], strides = [1, 1, 1]} : vector<2x8x32xbf16> to vector<2x8x8xbf16>
    %68 = vector.extract_strided_slice %16 {offsets = [0, 0, 24], sizes = [2, 8, 8], strides = [1, 1, 1]} : vector<2x8x32xbf16> to vector<2x8x8xbf16>
    "tpu.trace_start"() <{level = 10 : i32, message = "bqf,bkf->bqk"}> : () -> ()
    %cst_19 = arith.constant dense<0.000000e+00> : vector<2x8x8xf32>
    %69 = tpu.matmul %67, %68, %cst_19 {dimension_numbers = #tpu.dot_dimension_numbers<[2], [2], [1], [1], [0, 0, 0, 1, 1, 1], [0], [0]>} : vector<2x8x8xbf16>, vector<2x8x8xbf16>, vector<2x8x8xf32> -> vector<2x8x8xf32>
    "tpu.trace_stop"() : () -> ()
    %cst_20 = arith.constant dense<0xFF800000> : vector<2x8xf32>
    %70 = vector.multi_reduction <maximumf>, %69, %cst_20 [2] : vector<2x8x8xf32> to vector<2x8xf32>
    %71 = vector.shape_cast %70 : vector<2x8xf32> to vector<2x8x1xf32>
    %72 = vector.broadcast %71 : vector<2x8x1xf32> to vector<2x8x8xf32>
    %73 = arith.subf %69, %72 : vector<2x8x8xf32>
    %74 = math.exp %73 : vector<2x8x8xf32>
    %cst_21 = arith.constant dense<0.000000e+00> : vector<2x8xf32>
    %75 = vector.multi_reduction <add>, %74, %cst_21 [2] : vector<2x8x8xf32> to vector<2x8xf32>
    %76 = vector.shape_cast %75 : vector<2x8xf32> to vector<2x8x1xf32>
    %77 = tpu.reciprocal %76 {approx = true} : vector<2x8x1xf32> -> vector<2x8x1xf32>
    %78 = vector.broadcast %77 : vector<2x8x1xf32> to vector<2x8x8xf32>
    %79 = arith.mulf %74, %78 : vector<2x8x8xf32>
    %80 = arith.truncf %79 : vector<2x8x8xf32> to vector<2x8x8xbf16>
    %81 = vector.extract_strided_slice %18 {offsets = [0, 0, 24], sizes = [2, 8, 8], strides = [1, 1, 1]} : vector<2x8x32xbf16> to vector<2x8x8xbf16>
    "tpu.trace_start"() <{level = 10 : i32, message = "bqk,bkf->bqf"}> : () -> ()
    %cst_22 = arith.constant dense<0.000000e+00> : vector<2x8x8xf32>
    %82 = tpu.matmul %80, %81, %cst_22 {dimension_numbers = #tpu.dot_dimension_numbers<[2], [1], [1], [2], [0, 0, 0, 1, 1, 2], [0], [0]>} : vector<2x8x8xbf16>, vector<2x8x8xbf16>, vector<2x8x8xf32> -> vector<2x8x8xf32>
    "tpu.trace_stop"() : () -> ()
    %83 = tpu.concatenate %34, %50, %66, %82 in 2 : vector<2x8x8xf32>, vector<2x8x8xf32>, vector<2x8x8xf32>, vector<2x8x8xf32> -> vector<2x8x32xf32>
    %84 = vector.shape_cast %83 : vector<2x8x32xf32> to vector<16x32xf32>
    %c64 = arith.constant 64 : index
    %c0_23 = arith.constant 0 : index
    %85 = vector.load %arg2[%c64, %c0_23] : memref<224x128xbf16, #tpu.memory_space<vmem>>, vector<32x128xbf16>
    %86 = vector.extract_strided_slice %85 {offsets = [0, 0], sizes = [32, 32], strides = [1, 1]} : vector<32x128xbf16> to vector<32x32xbf16>
    %87 = arith.truncf %84 : vector<16x32xf32> to vector<16x32xbf16>
    %cst_24 = arith.constant dense<0.000000e+00> : vector<16x32xf32>
    %88 = tpu.matmul %87, %86, %cst_24 {dimension_numbers = #tpu.dot_dimension_numbers<[1], [0], [0], [1], [0, 0, 1, 1], [], []>} : vector<16x32xbf16>, vector<32x32xbf16>, vector<16x32xf32> -> vector<16x32xf32>
    %c2 = arith.constant 2 : index
    %c0_25 = arith.constant 0 : index
    %89 = vector.load %arg3[%c2, %c0_25] : memref<16x128xf32, #tpu.memory_space<vmem>>, vector<1x128xf32>
    %90 = vector.extract_strided_slice %89 {offsets = [0, 0], sizes = [1, 32], strides = [1, 1]} : vector<1x128xf32> to vector<1x32xf32>
    %91 = vector.broadcast %90 : vector<1x32xf32> to vector<16x32xf32>
    %92 = arith.addf %88, %91 : vector<16x32xf32>
    %93 = arith.addf %0, %92 : vector<16x32xf32>
    %cst_26 = arith.constant dense<0.000000e+00> : vector<16xf32>
    %94 = vector.multi_reduction <add>, %93, %cst_26 [1] : vector<16x32xf32> to vector<16xf32>
    %95 = vector.shape_cast %94 : vector<16xf32> to vector<16x1xf32>
    %cst_27 = arith.constant 3.200000e+01 : f32
    %96 = vector.broadcast %cst_27 : f32 to vector<16x1xf32>
    %97 = arith.divf %95, %96 : vector<16x1xf32>
    %98 = vector.broadcast %97 : vector<16x1xf32> to vector<16x32xf32>
    %99 = arith.subf %93, %98 : vector<16x32xf32>
    %100 = arith.mulf %99, %99 : vector<16x32xf32>
    %cst_28 = arith.constant dense<0.000000e+00> : vector<16xf32>
    %101 = vector.multi_reduction <add>, %100, %cst_28 [1] : vector<16x32xf32> to vector<16xf32>
    %102 = vector.shape_cast %101 : vector<16xf32> to vector<16x1xf32>
    %cst_29 = arith.constant 3.200000e+01 : f32
    %103 = vector.broadcast %cst_29 : f32 to vector<16x1xf32>
    %104 = arith.divf %102, %103 : vector<16x1xf32>
    %105 = vector.broadcast %97 : vector<16x1xf32> to vector<16x32xf32>
    %106 = arith.subf %93, %105 : vector<16x32xf32>
    %cst_30 = arith.constant 9.99999974E-6 : f32
    %107 = vector.broadcast %cst_30 : f32 to vector<16x1xf32>
    %108 = arith.addf %104, %107 : vector<16x1xf32>
    %109 = math.rsqrt %108 : vector<16x1xf32>
    %110 = vector.broadcast %109 : vector<16x1xf32> to vector<16x32xf32>
    %111 = arith.mulf %106, %110 : vector<16x32xf32>
    %c6 = arith.constant 6 : index
    %c0_31 = arith.constant 0 : index
    %112 = vector.load %arg3[%c6, %c0_31] : memref<16x128xf32, #tpu.memory_space<vmem>>, vector<1x128xf32>
    %113 = vector.extract_strided_slice %112 {offsets = [0, 0], sizes = [1, 32], strides = [1, 1]} : vector<1x128xf32> to vector<1x32xf32>
    %114 = vector.broadcast %113 : vector<1x32xf32> to vector<16x32xf32>
    %115 = arith.mulf %111, %114 : vector<16x32xf32>
    %c9 = arith.constant 9 : index
    %c0_32 = arith.constant 0 : index
    %116 = vector.load %arg3[%c9, %c0_32] : memref<16x128xf32, #tpu.memory_space<vmem>>, vector<1x128xf32>
    %117 = vector.extract_strided_slice %116 {offsets = [0, 0], sizes = [1, 32], strides = [1, 1]} : vector<1x128xf32> to vector<1x32xf32>
    %118 = vector.broadcast %117 : vector<1x32xf32> to vector<16x32xf32>
    %119 = arith.addf %115, %118 : vector<16x32xf32>
    %c32 = arith.constant 32 : index
    %c0_33 = arith.constant 0 : index
    %120 = vector.load %arg2[%c32, %c0_33] : memref<224x128xbf16, #tpu.memory_space<vmem>>, vector<32x128xbf16>
    %121 = vector.extract_strided_slice %120 {offsets = [0, 0], sizes = [32, 32], strides = [1, 1]} : vector<32x128xbf16> to vector<32x32xbf16>
    %122 = arith.truncf %119 : vector<16x32xf32> to vector<16x32xbf16>
    %cst_34 = arith.constant dense<0.000000e+00> : vector<16x32xf32>
    %123 = tpu.matmul %122, %121, %cst_34 {dimension_numbers = #tpu.dot_dimension_numbers<[1], [0], [0], [1], [0, 0, 1, 1], [], []>} : vector<16x32xbf16>, vector<32x32xbf16>, vector<16x32xf32> -> vector<16x32xf32>
    %c1 = arith.constant 1 : index
    %c0_35 = arith.constant 0 : index
    %124 = vector.load %arg3[%c1, %c0_35] : memref<16x128xf32, #tpu.memory_space<vmem>>, vector<1x128xf32>
    %125 = vector.extract_strided_slice %124 {offsets = [0, 0], sizes = [1, 32], strides = [1, 1]} : vector<1x128xf32> to vector<1x32xf32>
    %126 = vector.broadcast %125 : vector<1x32xf32> to vector<16x32xf32>
    %127 = arith.addf %123, %126 : vector<16x32xf32>
    %128 = vector.extract_strided_slice %120 {offsets = [0, 32], sizes = [32, 64], strides = [1, 1]} : vector<32x128xbf16> to vector<32x64xbf16>
    %129 = arith.truncf %1 : vector<16x32xf32> to vector<16x32xbf16>
    %cst_36 = arith.constant dense<0.000000e+00> : vector<16x64xf32>
    %130 = tpu.matmul %129, %128, %cst_36 {dimension_numbers = #tpu.dot_dimension_numbers<[1], [0], [0], [1], [0, 0, 1, 1], [], []>} : vector<16x32xbf16>, vector<32x64xbf16>, vector<16x64xf32> -> vector<16x64xf32>
    %c1_37 = arith.constant 1 : index
    %c0_38 = arith.constant 0 : index
    %131 = vector.load %arg3[%c1_37, %c0_38] : memref<16x128xf32, #tpu.memory_space<vmem>>, vector<1x128xf32>
    %132 = vector.extract_strided_slice %131 {offsets = [0, 32], sizes = [1, 64], strides = [1, 1]} : vector<1x128xf32> to vector<1x64xf32>
    %133 = vector.broadcast %132 : vector<1x64xf32> to vector<16x64xf32>
    %134 = arith.addf %130, %133 : vector<16x64xf32>
    %135 = vector.extract_strided_slice %134 {offsets = [0, 0], sizes = [16, 32], strides = [1, 1]} : vector<16x64xf32> to vector<16x32xf32>
    %136 = vector.extract_strided_slice %134 {offsets = [0, 32], sizes = [16, 32], strides = [1, 1]} : vector<16x64xf32> to vector<16x32xf32>
    %137 = vector.shape_cast %127 : vector<16x32xf32> to vector<2x8x32xf32>
    %138 = arith.truncf %137 : vector<2x8x32xf32> to vector<2x8x32xbf16>
    %139 = vector.shape_cast %135 : vector<16x32xf32> to vector<2x8x32xf32>
    %140 = arith.truncf %139 : vector<2x8x32xf32> to vector<2x8x32xbf16>
    %141 = vector.shape_cast %136 : vector<16x32xf32> to vector<2x8x32xf32>
    %142 = arith.truncf %141 : vector<2x8x32xf32> to vector<2x8x32xbf16>
    %143 = vector.extract_strided_slice %138 {offsets = [0, 0, 0], sizes = [2, 8, 8], strides = [1, 1, 1]} : vector<2x8x32xbf16> to vector<2x8x8xbf16>
    %144 = vector.extract_strided_slice %140 {offsets = [0, 0, 0], sizes = [2, 8, 8], strides = [1, 1, 1]} : vector<2x8x32xbf16> to vector<2x8x8xbf16>
    "tpu.trace_start"() <{level = 10 : i32, message = "bqf,bkf->bqk"}> : () -> ()
    %cst_39 = arith.constant dense<0.000000e+00> : vector<2x8x8xf32>
    %145 = tpu.matmul %143, %144, %cst_39 {dimension_numbers = #tpu.dot_dimension_numbers<[2], [2], [1], [1], [0, 0, 0, 1, 1, 1], [0], [0]>} : vector<2x8x8xbf16>, vector<2x8x8xbf16>, vector<2x8x8xf32> -> vector<2x8x8xf32>
    "tpu.trace_stop"() : () -> ()
    %cst_40 = arith.constant dense<0xFF800000> : vector<2x8xf32>
    %146 = vector.multi_reduction <maximumf>, %145, %cst_40 [2] : vector<2x8x8xf32> to vector<2x8xf32>
    %147 = vector.shape_cast %146 : vector<2x8xf32> to vector<2x8x1xf32>
    %148 = vector.broadcast %147 : vector<2x8x1xf32> to vector<2x8x8xf32>
    %149 = arith.subf %145, %148 : vector<2x8x8xf32>
    %150 = math.exp %149 : vector<2x8x8xf32>
    %cst_41 = arith.constant dense<0.000000e+00> : vector<2x8xf32>
    %151 = vector.multi_reduction <add>, %150, %cst_41 [2] : vector<2x8x8xf32> to vector<2x8xf32>
    %152 = vector.shape_cast %151 : vector<2x8xf32> to vector<2x8x1xf32>
    %153 = tpu.reciprocal %152 {approx = true} : vector<2x8x1xf32> -> vector<2x8x1xf32>
    %154 = vector.broadcast %153 : vector<2x8x1xf32> to vector<2x8x8xf32>
    %155 = arith.mulf %150, %154 : vector<2x8x8xf32>
    %156 = arith.truncf %155 : vector<2x8x8xf32> to vector<2x8x8xbf16>
    %157 = vector.extract_strided_slice %142 {offsets = [0, 0, 0], sizes = [2, 8, 8], strides = [1, 1, 1]} : vector<2x8x32xbf16> to vector<2x8x8xbf16>
    "tpu.trace_start"() <{level = 10 : i32, message = "bqk,bkf->bqf"}> : () -> ()
    %cst_42 = arith.constant dense<0.000000e+00> : vector<2x8x8xf32>
    %158 = tpu.matmul %156, %157, %cst_42 {dimension_numbers = #tpu.dot_dimension_numbers<[2], [1], [1], [2], [0, 0, 0, 1, 1, 2], [0], [0]>} : vector<2x8x8xbf16>, vector<2x8x8xbf16>, vector<2x8x8xf32> -> vector<2x8x8xf32>
    "tpu.trace_stop"() : () -> ()
    %159 = vector.extract_strided_slice %138 {offsets = [0, 0, 8], sizes = [2, 8, 8], strides = [1, 1, 1]} : vector<2x8x32xbf16> to vector<2x8x8xbf16>
    %160 = vector.extract_strided_slice %140 {offsets = [0, 0, 8], sizes = [2, 8, 8], strides = [1, 1, 1]} : vector<2x8x32xbf16> to vector<2x8x8xbf16>
    "tpu.trace_start"() <{level = 10 : i32, message = "bqf,bkf->bqk"}> : () -> ()
    %cst_43 = arith.constant dense<0.000000e+00> : vector<2x8x8xf32>
    %161 = tpu.matmul %159, %160, %cst_43 {dimension_numbers = #tpu.dot_dimension_numbers<[2], [2], [1], [1], [0, 0, 0, 1, 1, 1], [0], [0]>} : vector<2x8x8xbf16>, vector<2x8x8xbf16>, vector<2x8x8xf32> -> vector<2x8x8xf32>
    "tpu.trace_stop"() : () -> ()
    %cst_44 = arith.constant dense<0xFF800000> : vector<2x8xf32>
    %162 = vector.multi_reduction <maximumf>, %161, %cst_44 [2] : vector<2x8x8xf32> to vector<2x8xf32>
    %163 = vector.shape_cast %162 : vector<2x8xf32> to vector<2x8x1xf32>
    %164 = vector.broadcast %163 : vector<2x8x1xf32> to vector<2x8x8xf32>
    %165 = arith.subf %161, %164 : vector<2x8x8xf32>
    %166 = math.exp %165 : vector<2x8x8xf32>
    %cst_45 = arith.constant dense<0.000000e+00> : vector<2x8xf32>
    %167 = vector.multi_reduction <add>, %166, %cst_45 [2] : vector<2x8x8xf32> to vector<2x8xf32>
    %168 = vector.shape_cast %167 : vector<2x8xf32> to vector<2x8x1xf32>
    %169 = tpu.reciprocal %168 {approx = true} : vector<2x8x1xf32> -> vector<2x8x1xf32>
    %170 = vector.broadcast %169 : vector<2x8x1xf32> to vector<2x8x8xf32>
    %171 = arith.mulf %166, %170 : vector<2x8x8xf32>
    %172 = arith.truncf %171 : vector<2x8x8xf32> to vector<2x8x8xbf16>
    %173 = vector.extract_strided_slice %142 {offsets = [0, 0, 8], sizes = [2, 8, 8], strides = [1, 1, 1]} : vector<2x8x32xbf16> to vector<2x8x8xbf16>
    "tpu.trace_start"() <{level = 10 : i32, message = "bqk,bkf->bqf"}> : () -> ()
    %cst_46 = arith.constant dense<0.000000e+00> : vector<2x8x8xf32>
    %174 = tpu.matmul %172, %173, %cst_46 {dimension_numbers = #tpu.dot_dimension_numbers<[2], [1], [1], [2], [0, 0, 0, 1, 1, 2], [0], [0]>} : vector<2x8x8xbf16>, vector<2x8x8xbf16>, vector<2x8x8xf32> -> vector<2x8x8xf32>
    "tpu.trace_stop"() : () -> ()
    %175 = vector.extract_strided_slice %138 {offsets = [0, 0, 16], sizes = [2, 8, 8], strides = [1, 1, 1]} : vector<2x8x32xbf16> to vector<2x8x8xbf16>
    %176 = vector.extract_strided_slice %140 {offsets = [0, 0, 16], sizes = [2, 8, 8], strides = [1, 1, 1]} : vector<2x8x32xbf16> to vector<2x8x8xbf16>
    "tpu.trace_start"() <{level = 10 : i32, message = "bqf,bkf->bqk"}> : () -> ()
    %cst_47 = arith.constant dense<0.000000e+00> : vector<2x8x8xf32>
    %177 = tpu.matmul %175, %176, %cst_47 {dimension_numbers = #tpu.dot_dimension_numbers<[2], [2], [1], [1], [0, 0, 0, 1, 1, 1], [0], [0]>} : vector<2x8x8xbf16>, vector<2x8x8xbf16>, vector<2x8x8xf32> -> vector<2x8x8xf32>
    "tpu.trace_stop"() : () -> ()
    %cst_48 = arith.constant dense<0xFF800000> : vector<2x8xf32>
    %178 = vector.multi_reduction <maximumf>, %177, %cst_48 [2] : vector<2x8x8xf32> to vector<2x8xf32>
    %179 = vector.shape_cast %178 : vector<2x8xf32> to vector<2x8x1xf32>
    %180 = vector.broadcast %179 : vector<2x8x1xf32> to vector<2x8x8xf32>
    %181 = arith.subf %177, %180 : vector<2x8x8xf32>
    %182 = math.exp %181 : vector<2x8x8xf32>
    %cst_49 = arith.constant dense<0.000000e+00> : vector<2x8xf32>
    %183 = vector.multi_reduction <add>, %182, %cst_49 [2] : vector<2x8x8xf32> to vector<2x8xf32>
    %184 = vector.shape_cast %183 : vector<2x8xf32> to vector<2x8x1xf32>
    %185 = tpu.reciprocal %184 {approx = true} : vector<2x8x1xf32> -> vector<2x8x1xf32>
    %186 = vector.broadcast %185 : vector<2x8x1xf32> to vector<2x8x8xf32>
    %187 = arith.mulf %182, %186 : vector<2x8x8xf32>
    %188 = arith.truncf %187 : vector<2x8x8xf32> to vector<2x8x8xbf16>
    %189 = vector.extract_strided_slice %142 {offsets = [0, 0, 16], sizes = [2, 8, 8], strides = [1, 1, 1]} : vector<2x8x32xbf16> to vector<2x8x8xbf16>
    "tpu.trace_start"() <{level = 10 : i32, message = "bqk,bkf->bqf"}> : () -> ()
    %cst_50 = arith.constant dense<0.000000e+00> : vector<2x8x8xf32>
    %190 = tpu.matmul %188, %189, %cst_50 {dimension_numbers = #tpu.dot_dimension_numbers<[2], [1], [1], [2], [0, 0, 0, 1, 1, 2], [0], [0]>} : vector<2x8x8xbf16>, vector<2x8x8xbf16>, vector<2x8x8xf32> -> vector<2x8x8xf32>
    "tpu.trace_stop"() : () -> ()
    %191 = vector.extract_strided_slice %138 {offsets = [0, 0, 24], sizes = [2, 8, 8], strides = [1, 1, 1]} : vector<2x8x32xbf16> to vector<2x8x8xbf16>
    %192 = vector.extract_strided_slice %140 {offsets = [0, 0, 24], sizes = [2, 8, 8], strides = [1, 1, 1]} : vector<2x8x32xbf16> to vector<2x8x8xbf16>
    "tpu.trace_start"() <{level = 10 : i32, message = "bqf,bkf->bqk"}> : () -> ()
    %cst_51 = arith.constant dense<0.000000e+00> : vector<2x8x8xf32>
    %193 = tpu.matmul %191, %192, %cst_51 {dimension_numbers = #tpu.dot_dimension_numbers<[2], [2], [1], [1], [0, 0, 0, 1, 1, 1], [0], [0]>} : vector<2x8x8xbf16>, vector<2x8x8xbf16>, vector<2x8x8xf32> -> vector<2x8x8xf32>
    "tpu.trace_stop"() : () -> ()
    %cst_52 = arith.constant dense<0xFF800000> : vector<2x8xf32>
    %194 = vector.multi_reduction <maximumf>, %193, %cst_52 [2] : vector<2x8x8xf32> to vector<2x8xf32>
    %195 = vector.shape_cast %194 : vector<2x8xf32> to vector<2x8x1xf32>
    %196 = vector.broadcast %195 : vector<2x8x1xf32> to vector<2x8x8xf32>
    %197 = arith.subf %193, %196 : vector<2x8x8xf32>
    %198 = math.exp %197 : vector<2x8x8xf32>
    %cst_53 = arith.constant dense<0.000000e+00> : vector<2x8xf32>
    %199 = vector.multi_reduction <add>, %198, %cst_53 [2] : vector<2x8x8xf32> to vector<2x8xf32>
    %200 = vector.shape_cast %199 : vector<2x8xf32> to vector<2x8x1xf32>
    %201 = tpu.reciprocal %200 {approx = true} : vector<2x8x1xf32> -> vector<2x8x1xf32>
    %202 = vector.broadcast %201 : vector<2x8x1xf32> to vector<2x8x8xf32>
    %203 = arith.mulf %198, %202 : vector<2x8x8xf32>
    %204 = arith.truncf %203 : vector<2x8x8xf32> to vector<2x8x8xbf16>
    %205 = vector.extract_strided_slice %142 {offsets = [0, 0, 24], sizes = [2, 8, 8], strides = [1, 1, 1]} : vector<2x8x32xbf16> to vector<2x8x8xbf16>
    "tpu.trace_start"() <{level = 10 : i32, message = "bqk,bkf->bqf"}> : () -> ()
    %cst_54 = arith.constant dense<0.000000e+00> : vector<2x8x8xf32>
    %206 = tpu.matmul %204, %205, %cst_54 {dimension_numbers = #tpu.dot_dimension_numbers<[2], [1], [1], [2], [0, 0, 0, 1, 1, 2], [0], [0]>} : vector<2x8x8xbf16>, vector<2x8x8xbf16>, vector<2x8x8xf32> -> vector<2x8x8xf32>
    "tpu.trace_stop"() : () -> ()
    %207 = tpu.concatenate %158, %174, %190, %206 in 2 : vector<2x8x8xf32>, vector<2x8x8xf32>, vector<2x8x8xf32>, vector<2x8x8xf32> -> vector<2x8x32xf32>
    %208 = vector.shape_cast %207 : vector<2x8x32xf32> to vector<16x32xf32>
    %c96 = arith.constant 96 : index
    %c0_55 = arith.constant 0 : index
    %209 = vector.load %arg2[%c96, %c0_55] : memref<224x128xbf16, #tpu.memory_space<vmem>>, vector<32x128xbf16>
    %210 = vector.extract_strided_slice %209 {offsets = [0, 0], sizes = [32, 32], strides = [1, 1]} : vector<32x128xbf16> to vector<32x32xbf16>
    %211 = arith.truncf %208 : vector<16x32xf32> to vector<16x32xbf16>
    %cst_56 = arith.constant dense<0.000000e+00> : vector<16x32xf32>
    %212 = tpu.matmul %211, %210, %cst_56 {dimension_numbers = #tpu.dot_dimension_numbers<[1], [0], [0], [1], [0, 0, 1, 1], [], []>} : vector<16x32xbf16>, vector<32x32xbf16>, vector<16x32xf32> -> vector<16x32xf32>
    %c3 = arith.constant 3 : index
    %c0_57 = arith.constant 0 : index
    %213 = vector.load %arg3[%c3, %c0_57] : memref<16x128xf32, #tpu.memory_space<vmem>>, vector<1x128xf32>
    %214 = vector.extract_strided_slice %213 {offsets = [0, 0], sizes = [1, 32], strides = [1, 1]} : vector<1x128xf32> to vector<1x32xf32>
    %215 = vector.broadcast %214 : vector<1x32xf32> to vector<16x32xf32>
    %216 = arith.addf %212, %215 : vector<16x32xf32>
    %217 = arith.addf %119, %216 : vector<16x32xf32>
    %cst_58 = arith.constant dense<0.000000e+00> : vector<16xf32>
    %218 = vector.multi_reduction <add>, %217, %cst_58 [1] : vector<16x32xf32> to vector<16xf32>
    %219 = vector.shape_cast %218 : vector<16xf32> to vector<16x1xf32>
    %cst_59 = arith.constant 3.200000e+01 : f32
    %220 = vector.broadcast %cst_59 : f32 to vector<16x1xf32>
    %221 = arith.divf %219, %220 : vector<16x1xf32>
    %222 = vector.broadcast %221 : vector<16x1xf32> to vector<16x32xf32>
    %223 = arith.subf %217, %222 : vector<16x32xf32>
    %224 = arith.mulf %223, %223 : vector<16x32xf32>
    %cst_60 = arith.constant dense<0.000000e+00> : vector<16xf32>
    %225 = vector.multi_reduction <add>, %224, %cst_60 [1] : vector<16x32xf32> to vector<16xf32>
    %226 = vector.shape_cast %225 : vector<16xf32> to vector<16x1xf32>
    %cst_61 = arith.constant 3.200000e+01 : f32
    %227 = vector.broadcast %cst_61 : f32 to vector<16x1xf32>
    %228 = arith.divf %226, %227 : vector<16x1xf32>
    %229 = vector.broadcast %221 : vector<16x1xf32> to vector<16x32xf32>
    %230 = arith.subf %217, %229 : vector<16x32xf32>
    %cst_62 = arith.constant 9.99999974E-6 : f32
    %231 = vector.broadcast %cst_62 : f32 to vector<16x1xf32>
    %232 = arith.addf %228, %231 : vector<16x1xf32>
    %233 = math.rsqrt %232 : vector<16x1xf32>
    %234 = vector.broadcast %233 : vector<16x1xf32> to vector<16x32xf32>
    %235 = arith.mulf %230, %234 : vector<16x32xf32>
    %c7 = arith.constant 7 : index
    %c0_63 = arith.constant 0 : index
    %236 = vector.load %arg3[%c7, %c0_63] : memref<16x128xf32, #tpu.memory_space<vmem>>, vector<1x128xf32>
    %237 = vector.extract_strided_slice %236 {offsets = [0, 0], sizes = [1, 32], strides = [1, 1]} : vector<1x128xf32> to vector<1x32xf32>
    %238 = vector.broadcast %237 : vector<1x32xf32> to vector<16x32xf32>
    %239 = arith.mulf %235, %238 : vector<16x32xf32>
    %c10 = arith.constant 10 : index
    %c0_64 = arith.constant 0 : index
    %240 = vector.load %arg3[%c10, %c0_64] : memref<16x128xf32, #tpu.memory_space<vmem>>, vector<1x128xf32>
    %241 = vector.extract_strided_slice %240 {offsets = [0, 0], sizes = [1, 32], strides = [1, 1]} : vector<1x128xf32> to vector<1x32xf32>
    %242 = vector.broadcast %241 : vector<1x32xf32> to vector<16x32xf32>
    %243 = arith.addf %239, %242 : vector<16x32xf32>
    %c128 = arith.constant 128 : index
    %c0_65 = arith.constant 0 : index
    %244 = vector.load %arg2[%c128, %c0_65] : memref<224x128xbf16, #tpu.memory_space<vmem>>, vector<32x128xbf16>
    %245 = vector.extract_strided_slice %244 {offsets = [0, 0], sizes = [32, 64], strides = [1, 1]} : vector<32x128xbf16> to vector<32x64xbf16>
    %246 = arith.truncf %243 : vector<16x32xf32> to vector<16x32xbf16>
    %cst_66 = arith.constant dense<0.000000e+00> : vector<16x64xf32>
    %247 = tpu.matmul %246, %245, %cst_66 {dimension_numbers = #tpu.dot_dimension_numbers<[1], [0], [0], [1], [0, 0, 1, 1], [], []>} : vector<16x32xbf16>, vector<32x64xbf16>, vector<16x64xf32> -> vector<16x64xf32>
    %c4 = arith.constant 4 : index
    %c0_67 = arith.constant 0 : index
    %248 = vector.load %arg3[%c4, %c0_67] : memref<16x128xf32, #tpu.memory_space<vmem>>, vector<1x128xf32>
    %249 = vector.extract_strided_slice %248 {offsets = [0, 0], sizes = [1, 64], strides = [1, 1]} : vector<1x128xf32> to vector<1x64xf32>
    %250 = vector.broadcast %249 : vector<1x64xf32> to vector<16x64xf32>
    %251 = arith.addf %247, %250 : vector<16x64xf32>
    %cst_68 = arith.constant 0.000000e+00 : f32
    %252 = vector.broadcast %cst_68 : f32 to vector<16x64xf32>
    %253 = arith.maximumf %251, %252 : vector<16x64xf32>
    %c160 = arith.constant 160 : index
    %c0_69 = arith.constant 0 : index
    %254 = vector.load %arg2[%c160, %c0_69] : memref<224x128xbf16, #tpu.memory_space<vmem>>, vector<64x128xbf16>
    %255 = vector.extract_strided_slice %254 {offsets = [0, 0], sizes = [64, 32], strides = [1, 1]} : vector<64x128xbf16> to vector<64x32xbf16>
    %256 = arith.truncf %253 : vector<16x64xf32> to vector<16x64xbf16>
    %cst_70 = arith.constant dense<0.000000e+00> : vector<16x32xf32>
    %257 = tpu.matmul %256, %255, %cst_70 {dimension_numbers = #tpu.dot_dimension_numbers<[1], [0], [0], [1], [0, 0, 1, 1], [], []>} : vector<16x64xbf16>, vector<64x32xbf16>, vector<16x32xf32> -> vector<16x32xf32>
    %c5 = arith.constant 5 : index
    %c0_71 = arith.constant 0 : index
    %258 = vector.load %arg3[%c5, %c0_71] : memref<16x128xf32, #tpu.memory_space<vmem>>, vector<1x128xf32>
    %259 = vector.extract_strided_slice %258 {offsets = [0, 0], sizes = [1, 32], strides = [1, 1]} : vector<1x128xf32> to vector<1x32xf32>
    %260 = vector.broadcast %259 : vector<1x32xf32> to vector<16x32xf32>
    %261 = arith.addf %257, %260 : vector<16x32xf32>
    %262 = arith.addf %243, %261 : vector<16x32xf32>
    %cst_72 = arith.constant dense<0.000000e+00> : vector<16xf32>
    %263 = vector.multi_reduction <add>, %262, %cst_72 [1] : vector<16x32xf32> to vector<16xf32>
    %264 = vector.shape_cast %263 : vector<16xf32> to vector<16x1xf32>
    %cst_73 = arith.constant 3.200000e+01 : f32
    %265 = vector.broadcast %cst_73 : f32 to vector<16x1xf32>
    %266 = arith.divf %264, %265 : vector<16x1xf32>
    %267 = vector.broadcast %266 : vector<16x1xf32> to vector<16x32xf32>
    %268 = arith.subf %262, %267 : vector<16x32xf32>
    %269 = arith.mulf %268, %268 : vector<16x32xf32>
    %cst_74 = arith.constant dense<0.000000e+00> : vector<16xf32>
    %270 = vector.multi_reduction <add>, %269, %cst_74 [1] : vector<16x32xf32> to vector<16xf32>
    %271 = vector.shape_cast %270 : vector<16xf32> to vector<16x1xf32>
    %cst_75 = arith.constant 3.200000e+01 : f32
    %272 = vector.broadcast %cst_75 : f32 to vector<16x1xf32>
    %273 = arith.divf %271, %272 : vector<16x1xf32>
    %274 = vector.broadcast %266 : vector<16x1xf32> to vector<16x32xf32>
    %275 = arith.subf %262, %274 : vector<16x32xf32>
    %cst_76 = arith.constant 9.99999974E-6 : f32
    %276 = vector.broadcast %cst_76 : f32 to vector<16x1xf32>
    %277 = arith.addf %273, %276 : vector<16x1xf32>
    %278 = math.rsqrt %277 : vector<16x1xf32>
    %279 = vector.broadcast %278 : vector<16x1xf32> to vector<16x32xf32>
    %280 = arith.mulf %275, %279 : vector<16x32xf32>
    %c8 = arith.constant 8 : index
    %c0_77 = arith.constant 0 : index
    %281 = vector.load %arg3[%c8, %c0_77] : memref<16x128xf32, #tpu.memory_space<vmem>>, vector<1x128xf32>
    %282 = vector.extract_strided_slice %281 {offsets = [0, 0], sizes = [1, 32], strides = [1, 1]} : vector<1x128xf32> to vector<1x32xf32>
    %283 = vector.broadcast %282 : vector<1x32xf32> to vector<16x32xf32>
    %284 = arith.mulf %280, %283 : vector<16x32xf32>
    %c11 = arith.constant 11 : index
    %c0_78 = arith.constant 0 : index
    %285 = vector.load %arg3[%c11, %c0_78] : memref<16x128xf32, #tpu.memory_space<vmem>>, vector<1x128xf32>
    %286 = vector.extract_strided_slice %285 {offsets = [0, 0], sizes = [1, 32], strides = [1, 1]} : vector<1x128xf32> to vector<1x32xf32>
    %287 = vector.broadcast %286 : vector<1x32xf32> to vector<16x32xf32>
    %288 = arith.addf %284, %287 : vector<16x32xf32>
    %c0_79 = arith.constant 0 : index
    %c0_80 = arith.constant 0 : index
    %289 = vector.load %arg4[%c0_79, %c0_80] : memref<16x32xf32, #tpu.memory_space<vmem>>, vector<16x32xf32>
    tpu.vector_store %arg4[%c0_79, %c0_80], %288 {strides = array<i32>} : memref<16x32xf32, #tpu.memory_space<vmem>>, vector<16x32xf32>,
    return
  }
}

</mosaic_0001>

<llo_original>
// kernel: decoder_layer.1
$region0: #{decoder_layer.1}
  #allocation0 [shape = 'u32[]', space=smem, size = 0x4, offset = 0x4, fixed_abs, tag = 'smem constant byte address 0x4 - core index']
  #allocation1 [shape = 'u32[72,128]{1,0:T(1,128)}', space=vmem, size = 0x9000, scoped, tag = 'internal scratch']
  %s0 = inlined_call_operand.hbm [shape: f32[16,32], index: 0, kind: input, shape index: {}]
  %s1 = inlined_call_operand.hbm [shape: f32[16,32], index: 1, kind: input, shape index: {}]
  %s2 = inlined_call_operand.hbm [shape: bf16[224,128], index: 2, kind: input, shape index: {}]
  %s3 = inlined_call_operand.hbm [shape: f32[16,128], index: 3, kind: input, shape index: {}]
  %s4 = inlined_call_operand.hbm [shape: f32[16,32], index: 4, kind: output, shape index: {}]
  %s5 = sld [smem:[#allocation0]]
  $region42: #{decoder_layer.1} parent=0
    _
  %s7 = ssub.s32 1, %s5
  %s8 = scalar_select 0, %s7, %s5
  $region1: #{decoder_layer.1} parent=0
    #allocation2 [shape = 'u8[8192]{0}', space=vmem, size = 0x2000, scoped, tag = 'input window, operand 0, single buffered']
    #allocation3 [shape = 's32[1]{0}', space=sflag, size = 0x4, scoped, tag = 'scoped memory for decoder_layer.1']
    #allocation4 [shape = 's32[1]{0}', space=sflag, size = 0x4, scoped, tag = 'scoped memory for decoder_layer.1']
    #allocation5 [shape = 'u8[8192]{0}', space=vmem, size = 0x2000, scoped, tag = 'input window, operand 1, single buffered']
    #allocation6 [shape = 's32[1]{0}', space=sflag, size = 0x4, scoped, tag = 'scoped memory for decoder_layer.1']
    #allocation7 [shape = 'u8[57344]{0}', space=vmem, size = 0xe000, scoped, tag = 'input window, operand 2, single buffered']
    #allocation8 [shape = 'u8[8192]{0}', space=vmem, size = 0x2000, scoped, tag = 'input window, operand 3, single buffered']
    #allocation9 [shape = 's32[1]{0}', space=sflag, size = 0x4, scoped, tag = 'scoped memory for decoder_layer.1']
    #allocation10 [shape = 'u8[8192]{0}', space=vmem, size = 0x2000, scoped, tag = 'output window, operand 0, single buffered']
    %9 = vsyncpa [#allocation3], 0
    %10 = vsyncpa [#allocation6], 0
    %11 = vsyncpa [#allocation9], 0
    %12 = vsyncpa [#allocation4], 0
    // Predicated region
    $region2: #{decoder_layer.1} parent=1 // pred_check
      _
    $region3: #{decoder_layer.1} parent=1 // pred_check_branch
      %14 = sbr.rel (0) target = $region5
    $region4: #{decoder_layer.1} parent=1 // pred_region
      %16 = vsyncadd [#allocation3], 0
      %s17 = sshll.u32 %s0, 4
      %s18 = int_to_ptr.hbm [resolvable:$true] %s17
      %s19 = sshll.u32 [#allocation2], 4
      %s20 = int_to_ptr.vmem [resolvable:$true] %s19
      %25 = dma.hbm_to_vmem [thread:$0]  %s18, 256, %s20, [#allocation3], 128, 128, 8
    $region5: #{decoder_layer.1} parent=1 // pred_fallthru
      _
    // Predicated region
    $region6: #{decoder_layer.1} parent=1 // pred_check
      _
    $region7: #{decoder_layer.1} parent=1 // pred_check_branch
      %27 = sbr.rel (0) target = $region9
    $region8: #{decoder_layer.1} parent=1 // pred_region
      %29 = vsyncadd [#allocation6], 0
      %s30 = sshll.u32 %s1, 4
      %s31 = int_to_ptr.hbm [resolvable:$true] %s30
      %s32 = sshll.u32 [#allocation5], 4
      %s33 = int_to_ptr.vmem [resolvable:$true] %s32
      %38 = dma.hbm_to_vmem [thread:$0]  %s31, 256, %s33, [#allocation6], 128, 128, 8
    $region9: #{decoder_layer.1} parent=1 // pred_fallthru
      _
    // Predicated region
    $region10: #{decoder_layer.1} parent=1 // pred_check
      _
    $region11: #{decoder_layer.1} parent=1 // pred_check_branch
      %40 = sbr.rel (0) target = $region13
    $region12: #{decoder_layer.1} parent=1 // pred_region
      %42 = vsyncadd [#allocation6], 0
      %s43 = sshll.u32 %s2, 4
      %s44 = int_to_ptr.hbm [resolvable:$true] %s43
      %s45 = sshll.u32 [#allocation7], 4
      %s46 = int_to_ptr.vmem [resolvable:$true] %s45
      %51 = dma.hbm_to_vmem [thread:$0]  %s44, 1792, %s46, [#allocation6], 64, 64, 4
    $region13: #{decoder_layer.1} parent=1 // pred_fallthru
      _
    // Predicated region
    $region14: #{decoder_layer.1} parent=1 // pred_check
      _
    $region15: #{decoder_layer.1} parent=1 // pred_check_branch
      %53 = sbr.rel (0) target = $region17
    $region16: #{decoder_layer.1} parent=1 // pred_region
      %55 = vsyncadd [#allocation9], 0
      %s56 = sshll.u32 %s3, 4
      %s57 = int_to_ptr.hbm [resolvable:$true] %s56
      %s58 = sshll.u32 [#allocation8], 4
      %s59 = int_to_ptr.vmem [resolvable:$true] %s58
      %64 = dma.hbm_to_vmem [thread:$0]  %s57, 256, %s59, [#allocation9], 128, 128, 8
    $region17: #{decoder_layer.1} parent=1 // pred_fallthru
      _
    // Predicated region
    $region18: #{decoder_layer.1} parent=1 // pred_check
      _
    $region19: #{decoder_layer.1} parent=1 // pred_check_branch
      %66 = sbr.rel (0) target = $region21
    $region20: #{decoder_layer.1} parent=1 // pred_region
      %68 = dma.done [#allocation3], 256
    $region21: #{decoder_layer.1} parent=1 // pred_fallthru
      _
    // Predicated region
    $region22: #{decoder_layer.1} parent=1 // pred_check
      _
    $region23: #{decoder_layer.1} parent=1 // pred_check_branch
      %70 = sbr.rel (0) target = $region25
    $region24: #{decoder_layer.1} parent=1 // pred_region
      %72 = dma.done [#allocation6], 256
    $region25: #{decoder_layer.1} parent=1 // pred_fallthru
      _
    // Predicated region
    $region26: #{decoder_layer.1} parent=1 // pred_check
      _
    $region27: #{decoder_layer.1} parent=1 // pred_check_branch
      %74 = sbr.rel (0) target = $region29
    $region28: #{decoder_layer.1} parent=1 // pred_region
      %76 = dma.done [#allocation6], 1792
    $region29: #{decoder_layer.1} parent=1 // pred_fallthru
      _
    // Predicated region
    $region30: #{decoder_layer.1} parent=1 // pred_check
      _
    $region31: #{decoder_layer.1} parent=1 // pred_check_branch
      %78 = sbr.rel (0) target = $region33
    $region32: #{decoder_layer.1} parent=1 // pred_region
      %80 = dma.done [#allocation9], 256
    $region33: #{decoder_layer.1} parent=1 // pred_fallthru
      _
    %v82 = vld [vmem:[#allocation2] sm:$0xff]
    %v83 = vld [vmem:[#allocation2 + $0x8] sm:$0xff]
    %v84 = vld [vmem:[#allocation5] sm:$0xff]
    %v85 = vld [vmem:[#allocation5 + $0x8] sm:$0xff]
    %v86 = vld [vmem:[#allocation7] sm:$0xf]
    %v87 = vld [vmem:[#allocation7 + $0x4] sm:$0xf]
    %v88 = vld [vmem:[#allocation7 + $0x8] sm:$0xf]
    %v89 = vld [vmem:[#allocation7 + $0xc] sm:$0xf]
    %v90 = vpack.c.bf16 %v83, %v82
    %v91 = vld [vmem:[#allocation8] sm:$0x1]
    %v92 = vperm.slane %v91, 0
    %v97 = vunpack.c.l.b16 %v86
    %v98 = vunpack.c.l.b16 %v87
    %v99 = vunpack.c.l.b16 %v88
    %v100 = vunpack.c.l.b16 %v89
    %v101 = vpack.c.b16 %v98, %v97
    %v102 = vpack.c.b16 %v100, %v99
    %vm105 = vcmask 261120
    %v107 = vsel %vm105, %v90, 0
    %109 = vmatpush.bf16.msra.mxu0 0
    %110 = vmatpush.bf16.msra.mxu0 0
    %111 = vmatpush.bf16.msra.mxu0 0
    %112 = vmatpush.bf16.msra.mxu0 0
    %113 = vmatpush.bf16.msra.mxu0 0
    %114 = vmatpush.bf16.msra.mxu0 0
    %115 = vmatpush.bf16.msra.mxu0 %v102
    %116 = vmatpush.bf16.msra.mxu0 %v101
    %117 = vmatmul.bf16.gmra.mxu0 %v107
    %v118 = vpop.f32.mrf.mxu0
    %v119 = vadd.f32 %v92, %v118
    %v120 = vpop.f32.mrf.mxu0
    %v121 = vadd.f32 %v92, %v120
    %122 = vdwg.mxu0
    %v123 = vpack.c.bf16 %v119, %v119
    %v124 = vpack.c.bf16 %v121, %v121
    %v126 = vunpack.c.l.b16 %v123
    %v127 = vpack.c.b16 %v126, %v126
    %128 = vrot.lane.b32.xlu0 %v127, 96
    %v129 = vpop.permute.xlu0 %128
    %vm130 = vcmask 64512
    %v132 = vsel %vm130, %v123, 0
    %v135 = vsel %vm130, %v129, 0
    %137 = vmatpush.bf16.xpose.msra.mxu0 0
    %138 = vmatpush.bf16.xpose.msra.mxu0 0
    %139 = vmatpush.bf16.xpose.msra.mxu0 0
    %140 = vmatpush.bf16.xpose.msra.mxu0 0
    %141 = vmatpush.bf16.xpose.msra.mxu0 0
    %142 = vmatpush.bf16.xpose.msra.mxu0 0
    %143 = vmatpush.bf16.xpose.msra.mxu0 0
    %144 = vmatpush.bf16.xpose.msra.mxu0 %v135
    %145 = vmatmul.bf16.gmra.mxu0 %v132
    %v146 = vpop.f32.mrf.mxu0
    %v147 = vadd.f32 0.0, %v146
    %v148 = vpop.f32.mrf.mxu0
    %149 = vdwg.mxu0
    %v151 = vunpack.c.l.b16 %v124
    %v152 = vpack.c.b16 %v151, %v151
    %153 = vrot.lane.b32.xlu0 %v152, 96
    %v154 = vpop.permute.xlu0 %153
    %v156 = vsel %vm130, %v124, 0
    %v159 = vsel %vm130, %v154, 0
    %161 = vmatpush.bf16.xpose.msra.mxu0 0
    %162 = vmatpush.bf16.xpose.msra.mxu0 0
    %163 = vmatpush.bf16.xpose.msra.mxu0 0
    %164 = vmatpush.bf16.xpose.msra.mxu0 0
    %165 = vmatpush.bf16.xpose.msra.mxu0 0
    %166 = vmatpush.bf16.xpose.msra.mxu0 0
    %167 = vmatpush.bf16.xpose.msra.mxu0 0
    %168 = vmatpush.bf16.xpose.msra.mxu0 %v159
    %169 = vmatmul.bf16.gmra.mxu0 %v156
    %v170 = vpop.f32.mrf.mxu0
    %v171 = vadd.f32 0.0, %v170
    %v172 = vpop.f32.mrf.mxu0
    %173 = vdwg.mxu0
    %v174 = vsel %vm130, %v147, -inf
    %175 = vmax.xlane.f32.xlu0 %v174
    %v176 = vpop.xlane.xlu0 %175
    %v177 = vsel %vm130, %v171, -inf
    %178 = vmax.xlane.f32.xlu0 %v177
    %v179 = vpop.xlane.xlu0 %178
    %v180 = vsub.f32 %v147, %v176
    %v181 = vsub.f32 %v171, %v179
    %v182 = vmul.f32 %v180, 1.442695
    %v183 = vpow.pop %v182
    %v184 = vmul.f32 %v181, 1.442695
    %v185 = vpow.pop %v184
    %v186 = vsel %vm130, %v183, 0.0
    %187 = vadd.xlane.f32.xlu0 %v186
    %v188 = vpop.xlane.xlu0 %187
    %v189 = vsel %vm130, %v185, 0.0
    %190 = vadd.xlane.f32.xlu0 %v189
    %v191 = vpop.xlane.xlu0 %190
    %v192 = vrcp.pop %v188
    %v193 = vrcp.pop %v191
    %v194 = vmul.f32 %v183, %v192
    %v195 = vmul.f32 %v185, %v193
    %v196 = vpack.c.bf16 %v194, %v194
    %v197 = vpack.c.bf16 %v195, %v195
    %198 = vrot.lane.b32.xlu0 %v127, 64
    %v199 = vpop.permute.xlu0 %198
    %v201 = vsel %vm130, %v196, 0
    %vm203 = vcmask 1043456
    %v205 = vsel %vm203, %v199, 0
    %207 = vmatpush.bf16.msra.mxu0 0
    %208 = vmatpush.bf16.msra.mxu0 0
    %209 = vmatpush.bf16.msra.mxu0 0
    %210 = vmatpush.bf16.msra.mxu0 0
    %211 = vmatpush.bf16.msra.mxu0 0
    %212 = vmatpush.bf16.msra.mxu0 0
    %213 = vmatpush.bf16.msra.mxu0 0
    %214 = vmatpush.bf16.msra.mxu0 %v205
    %215 = vmatmul.bf16.gmra.mxu0 %v201
    %v216 = vpop.f32.mrf.mxu0
    %v217 = vadd.f32 0.0, %v216
    %v218 = vpop.f32.mrf.mxu0
    %219 = vdwg.mxu0
    %220 = vrot.lane.b32.xlu0 %v152, 64
    %v221 = vpop.permute.xlu0 %220
    %v223 = vsel %vm130, %v197, 0
    %v226 = vsel %vm203, %v221, 0
    %228 = vmatpush.bf16.msra.mxu0 0
    %229 = vmatpush.bf16.msra.mxu0 0
    %230 = vmatpush.bf16.msra.mxu0 0
    %231 = vmatpush.bf16.msra.mxu0 0
    %232 = vmatpush.bf16.msra.mxu0 0
    %233 = vmatpush.bf16.msra.mxu0 0
    %234 = vmatpush.bf16.msra.mxu0 0
    %235 = vmatpush.bf16.msra.mxu0 %v226
    %236 = vmatmul.bf16.gmra.mxu0 %v223
    %v237 = vpop.f32.mrf.mxu0
    %v238 = vadd.f32 0.0, %v237
    %v239 = vpop.f32.mrf.mxu0
    %240 = vdwg.mxu0
    %241 = vrot.lane.b32.xlu0 %v127, 120
    %v242 = vpop.permute.xlu0 %241
    %243 = vrot.lane.b32.xlu0 %v127, 88
    %v244 = vpop.permute.xlu0 %243
    %v246 = vsel %vm130, %v242, 0
    %v249 = vsel %vm130, %v244, 0
    %251 = vmatpush.bf16.xpose.msra.mxu0 0
    %252 = vmatpush.bf16.xpose.msra.mxu0 0
    %253 = vmatpush.bf16.xpose.msra.mxu0 0
    %254 = vmatpush.bf16.xpose.msra.mxu0 0
    %255 = vmatpush.bf16.xpose.msra.mxu0 0
    %256 = vmatpush.bf16.xpose.msra.mxu0 0
    %257 = vmatpush.bf16.xpose.msra.mxu0 0
    %258 = vmatpush.bf16.xpose.msra.mxu0 %v249
    %259 = vmatmul.bf16.gmra.mxu0 %v246
    %v260 = vpop.f32.mrf.mxu0
    %v261 = vadd.f32 0.0, %v260
    %v262 = vpop.f32.mrf.mxu0
    %263 = vdwg.mxu0
    %264 = vrot.lane.b32.xlu0 %v152, 120
    %v265 = vpop.permute.xlu0 %264
    %266 = vrot.lane.b32.xlu0 %v152, 88
    %v267 = vpop.permute.xlu0 %266
    %v269 = vsel %vm130, %v265, 0
    %v272 = vsel %vm130, %v267, 0
    %274 = vmatpush.bf16.xpose.msra.mxu0 0
    %275 = vmatpush.bf16.xpose.msra.mxu0 0
    %276 = vmatpush.bf16.xpose.msra.mxu0 0
    %277 = vmatpush.bf16.xpose.msra.mxu0 0
    %278 = vmatpush.bf16.xpose.msra.mxu0 0
    %279 = vmatpush.bf16.xpose.msra.mxu0 0
    %280 = vmatpush.bf16.xpose.msra.mxu0 0
    %281 = vmatpush.bf16.xpose.msra.mxu0 %v272
    %282 = vmatmul.bf16.gmra.mxu0 %v269
    %v283 = vpop.f32.mrf.mxu0
    %v284 = vadd.f32 0.0, %v283
    %v285 = vpop.f32.mrf.mxu0
    %286 = vdwg.mxu0
    %v287 = vsel %vm130, %v261, -inf
    %288 = vmax.xlane.f32.xlu0 %v287
    %v289 = vpop.xlane.xlu0 %288
    %v290 = vsel %vm130, %v284, -inf
    %291 = vmax.xlane.f32.xlu0 %v290
    %v292 = vpop.xlane.xlu0 %291
    %v293 = vsub.f32 %v261, %v289
    %v294 = vsub.f32 %v284, %v292
    %v295 = vmul.f32 %v293, 1.442695
    %v296 = vpow.pop %v295
    %v297 = vmul.f32 %v294, 1.442695
    %v298 = vpow.pop %v297
    %v299 = vsel %vm130, %v296, 0.0
    %300 = vadd.xlane.f32.xlu0 %v299
    %v301 = vpop.xlane.xlu0 %300
    %v302 = vsel %vm130, %v298, 0.0
    %303 = vadd.xlane.f32.xlu0 %v302
    %v304 = vpop.xlane.xlu0 %303
    %v305 = vrcp.pop %v301
    %v306 = vrcp.pop %v304
    %v307 = vmul.f32 %v296, %v305
    %v308 = vmul.f32 %v298, %v306
    %v309 = vpack.c.bf16 %v307, %v307
    %v310 = vpack.c.bf16 %v308, %v308
    %311 = vrot.lane.b32.xlu0 %v127, 56
    %v312 = vpop.permute.xlu0 %311
    %v314 = vsel %vm130, %v309, 0
    %v317 = vsel %vm203, %v312, 0
    %319 = vmatpush.bf16.msra.mxu0 0
    %320 = vmatpush.bf16.msra.mxu0 0
    %321 = vmatpush.bf16.msra.mxu0 0
    %322 = vmatpush.bf16.msra.mxu0 0
    %323 = vmatpush.bf16.msra.mxu0 0
    %324 = vmatpush.bf16.msra.mxu0 0
    %325 = vmatpush.bf16.msra.mxu0 0
    %326 = vmatpush.bf16.msra.mxu0 %v317
    %327 = vmatmul.bf16.gmra.mxu0 %v314
    %v328 = vpop.f32.mrf.mxu0
    %v329 = vadd.f32 0.0, %v328
    %v330 = vpop.f32.mrf.mxu0
    %331 = vdwg.mxu0
    %332 = vrot.lane.b32.xlu0 %v152, 56
    %v333 = vpop.permute.xlu0 %332
    %v335 = vsel %vm130, %v310, 0
    %v338 = vsel %vm203, %v333, 0
    %340 = vmatpush.bf16.msra.mxu0 0
    %341 = vmatpush.bf16.msra.mxu0 0
    %342 = vmatpush.bf16.msra.mxu0 0
    %343 = vmatpush.bf16.msra.mxu0 0
    %344 = vmatpush.bf16.msra.mxu0 0
    %345 = vmatpush.bf16.msra.mxu0 0
    %346 = vmatpush.bf16.msra.mxu0 0
    %347 = vmatpush.bf16.msra.mxu0 %v338
    %348 = vmatmul.bf16.gmra.mxu0 %v335
    %v349 = vpop.f32.mrf.mxu0
    %v350 = vadd.f32 0.0, %v349
    %v351 = vpop.f32.mrf.mxu0
    %352 = vdwg.mxu0
    %353 = vrot.lane.b32.xlu0 %v127, 112
    %v354 = vpop.permute.xlu0 %353
    %355 = vrot.lane.b32.xlu0 %v127, 80
    %v356 = vpop.permute.xlu0 %355
    %v358 = vsel %vm130, %v354, 0
    %v361 = vsel %vm130, %v356, 0
    %363 = vmatpush.bf16.xpose.msra.mxu0 0
    %364 = vmatpush.bf16.xpose.msra.mxu0 0
    %365 = vmatpush.bf16.xpose.msra.mxu0 0
    %366 = vmatpush.bf16.xpose.msra.mxu0 0
    %367 = vmatpush.bf16.xpose.msra.mxu0 0
    %368 = vmatpush.bf16.xpose.msra.mxu0 0
    %369 = vmatpush.bf16.xpose.msra.mxu0 0
    %370 = vmatpush.bf16.xpose.msra.mxu0 %v361
    %371 = vmatmul.bf16.gmra.mxu0 %v358
    %v372 = vpop.f32.mrf.mxu0
    %v373 = vadd.f32 0.0, %v372
    %v374 = vpop.f32.mrf.mxu0
    %375 = vdwg.mxu0
    %376 = vrot.lane.b32.xlu0 %v152, 112
    %v377 = vpop.permute.xlu0 %376
    %378 = vrot.lane.b32.xlu0 %v152, 80
    %v379 = vpop.permute.xlu0 %378
    %v381 = vsel %vm130, %v377, 0
    %v384 = vsel %vm130, %v379, 0
    %386 = vmatpush.bf16.xpose.msra.mxu0 0
    %387 = vmatpush.bf16.xpose.msra.mxu0 0
    %388 = vmatpush.bf16.xpose.msra.mxu0 0
    %389 = vmatpush.bf16.xpose.msra.mxu0 0
    %390 = vmatpush.bf16.xpose.msra.mxu0 0
    %391 = vmatpush.bf16.xpose.msra.mxu0 0
    %392 = vmatpush.bf16.xpose.msra.mxu0 0
    %393 = vmatpush.bf16.xpose.msra.mxu0 %v384
    %394 = vmatmul.bf16.gmra.mxu0 %v381
    %v395 = vpop.f32.mrf.mxu0
    %v396 = vadd.f32 0.0, %v395
    %v397 = vpop.f32.mrf.mxu0
    %398 = vdwg.mxu0
    %v399 = vsel %vm130, %v373, -inf
    %400 = vmax.xlane.f32.xlu0 %v399
    %v401 = vpop.xlane.xlu0 %400
    %v402 = vsel %vm130, %v396, -inf
    %403 = vmax.xlane.f32.xlu0 %v402
    %v404 = vpop.xlane.xlu0 %403
    %v405 = vsub.f32 %v373, %v401
    %v406 = vsub.f32 %v396, %v404
    %v407 = vmul.f32 %v405, 1.442695
    %v408 = vpow.pop %v407
    %v409 = vmul.f32 %v406, 1.442695
    %v410 = vpow.pop %v409
    %v411 = vsel %vm130, %v408, 0.0
    %412 = vadd.xlane.f32.xlu0 %v411
    %v413 = vpop.xlane.xlu0 %412
    %v414 = vsel %vm130, %v410, 0.0
    %415 = vadd.xlane.f32.xlu0 %v414
    %v416 = vpop.xlane.xlu0 %415
    %v417 = vrcp.pop %v413
    %v418 = vrcp.pop %v416
    %v419 = vmul.f32 %v408, %v417
    %v420 = vmul.f32 %v410, %v418
    %v421 = vpack.c.bf16 %v419, %v419
    %v422 = vpack.c.bf16 %v420, %v420
    %423 = vrot.lane.b32.xlu0 %v127, 48
    %v424 = vpop.permute.xlu0 %423
    %v426 = vsel %vm130, %v421, 0
    %v429 = vsel %vm203, %v424, 0
    %431 = vmatpush.bf16.msra.mxu0 0
    %432 = vmatpush.bf16.msra.mxu0 0
    %433 = vmatpush.bf16.msra.mxu0 0
    %434 = vmatpush.bf16.msra.mxu0 0
    %435 = vmatpush.bf16.msra.mxu0 0
    %436 = vmatpush.bf16.msra.mxu0 0
    %437 = vmatpush.bf16.msra.mxu0 0
    %438 = vmatpush.bf16.msra.mxu0 %v429
    %439 = vmatmul.bf16.gmra.mxu0 %v426
    %v440 = vpop.f32.mrf.mxu0
    %v441 = vadd.f32 0.0, %v440
    %v442 = vpop.f32.mrf.mxu0
    %443 = vdwg.mxu0
    %444 = vrot.lane.b32.xlu0 %v152, 48
    %v445 = vpop.permute.xlu0 %444
    %v447 = vsel %vm130, %v422, 0
    %v450 = vsel %vm203, %v445, 0
    %452 = vmatpush.bf16.msra.mxu0 0
    %453 = vmatpush.bf16.msra.mxu0 0
    %454 = vmatpush.bf16.msra.mxu0 0
    %455 = vmatpush.bf16.msra.mxu0 0
    %456 = vmatpush.bf16.msra.mxu0 0
    %457 = vmatpush.bf16.msra.mxu0 0
    %458 = vmatpush.bf16.msra.mxu0 0
    %459 = vmatpush.bf16.msra.mxu0 %v450
    %460 = vmatmul.bf16.gmra.mxu0 %v447
    %v461 = vpop.f32.mrf.mxu0
    %v462 = vadd.f32 0.0, %v461
    %v463 = vpop.f32.mrf.mxu0
    %464 = vdwg.mxu0
    %465 = vrot.lane.b32.xlu0 %v127, 104
    %v466 = vpop.permute.xlu0 %465
    %467 = vrot.lane.b32.xlu0 %v127, 72
    %v468 = vpop.permute.xlu0 %467
    %v470 = vsel %vm130, %v466, 0
    %v473 = vsel %vm130, %v468, 0
    %475 = vmatpush.bf16.xpose.msra.mxu0 0
    %476 = vmatpush.bf16.xpose.msra.mxu0 0
    %477 = vmatpush.bf16.xpose.msra.mxu0 0
    %478 = vmatpush.bf16.xpose.msra.mxu0 0
    %479 = vmatpush.bf16.xpose.msra.mxu0 0
    %480 = vmatpush.bf16.xpose.msra.mxu0 0
    %481 = vmatpush.bf16.xpose.msra.mxu0 0
    %482 = vmatpush.bf16.xpose.msra.mxu0 %v473
    %483 = vmatmul.bf16.gmra.mxu0 %v470
    %v484 = vpop.f32.mrf.mxu0
    %v485 = vadd.f32 0.0, %v484
    %v486 = vpop.f32.mrf.mxu0
    %487 = vdwg.mxu0
    %488 = vrot.lane.b32.xlu0 %v152, 104
    %v489 = vpop.permute.xlu0 %488
    %490 = vrot.lane.b32.xlu0 %v152, 72
    %v491 = vpop.permute.xlu0 %490
    %v493 = vsel %vm130, %v489, 0
    %v496 = vsel %vm130, %v491, 0
    %498 = vmatpush.bf16.xpose.msra.mxu0 0
    %499 = vmatpush.bf16.xpose.msra.mxu0 0
    %500 = vmatpush.bf16.xpose.msra.mxu0 0
    %501 = vmatpush.bf16.xpose.msra.mxu0 0
    %502 = vmatpush.bf16.xpose.msra.mxu0 0
    %503 = vmatpush.bf16.xpose.msra.mxu0 0
    %504 = vmatpush.bf16.xpose.msra.mxu0 0
    %505 = vmatpush.bf16.xpose.msra.mxu0 %v496
    %506 = vmatmul.bf16.gmra.mxu0 %v493
    %v507 = vpop.f32.mrf.mxu0
    %v508 = vadd.f32 0.0, %v507
    %v509 = vpop.f32.mrf.mxu0
    %510 = vdwg.mxu0
    %v511 = vsel %vm130, %v485, -inf
    %512 = vmax.xlane.f32.xlu0 %v511
    %v513 = vpop.xlane.xlu0 %512
    %v514 = vsel %vm130, %v508, -inf
    %515 = vmax.xlane.f32.xlu0 %v514
    %v516 = vpop.xlane.xlu0 %515
    %v517 = vsub.f32 %v485, %v513
    %v518 = vsub.f32 %v508, %v516
    %v519 = vmul.f32 %v517, 1.442695
    %v520 = vpow.pop %v519
    %v521 = vmul.f32 %v518, 1.442695
    %v522 = vpow.pop %v521
    %v523 = vsel %vm130, %v520, 0.0
    %524 = vadd.xlane.f32.xlu0 %v523
    %v525 = vpop.xlane.xlu0 %524
    %v526 = vsel %vm130, %v522, 0.0
    %527 = vadd.xlane.f32.xlu0 %v526
    %v528 = vpop.xlane.xlu0 %527
    %v529 = vrcp.pop %v525
    %v530 = vrcp.pop %v528
    %v531 = vmul.f32 %v520, %v529
    %v532 = vmul.f32 %v522, %v530
    %v533 = vpack.c.bf16 %v531, %v531
    %v534 = vpack.c.bf16 %v532, %v532
    %535 = vrot.lane.b32.xlu0 %v127, 40
    %v536 = vpop.permute.xlu0 %535
    %v538 = vsel %vm130, %v533, 0
    %v541 = vsel %vm203, %v536, 0
    %543 = vmatpush.bf16.msra.mxu0 0
    %544 = vmatpush.bf16.msra.mxu0 0
    %545 = vmatpush.bf16.msra.mxu0 0
    %546 = vmatpush.bf16.msra.mxu0 0
    %547 = vmatpush.bf16.msra.mxu0 0
    %548 = vmatpush.bf16.msra.mxu0 0
    %549 = vmatpush.bf16.msra.mxu0 0
    %550 = vmatpush.bf16.msra.mxu0 %v541
    %551 = vmatmul.bf16.gmra.mxu0 %v538
    %v552 = vpop.f32.mrf.mxu0
    %v553 = vadd.f32 0.0, %v552
    %v554 = vpop.f32.mrf.mxu0
    %555 = vdwg.mxu0
    %556 = vrot.lane.b32.xlu0 %v152, 40
    %v557 = vpop.permute.xlu0 %556
    %v559 = vsel %vm130, %v534, 0
    %v562 = vsel %vm203, %v557, 0
    %564 = vmatpush.bf16.msra.mxu0 0
    %565 = vmatpush.bf16.msra.mxu0 0
    %566 = vmatpush.bf16.msra.mxu0 0
    %567 = vmatpush.bf16.msra.mxu0 0
    %568 = vmatpush.bf16.msra.mxu0 0
    %569 = vmatpush.bf16.msra.mxu0 0
    %570 = vmatpush.bf16.msra.mxu0 0
    %571 = vmatpush.bf16.msra.mxu0 %v562
    %572 = vmatmul.bf16.gmra.mxu0 %v559
    %v573 = vpop.f32.mrf.mxu0
    %v574 = vadd.f32 0.0, %v573
    %v575 = vpop.f32.mrf.mxu0
    %576 = vdwg.mxu0
    %579 = vrot.lane.b32.xlu0 %v329, 8
    %v580 = vpop.permute.xlu0 %579
    %581 = vrot.lane.b32.xlu0 %v350, 8
    %v582 = vpop.permute.xlu0 %581
    %587 = vrot.lane.b32.xlu0 %v441, 16
    %v588 = vpop.permute.xlu0 %587
    %589 = vrot.lane.b32.xlu0 %v462, 16
    %v590 = vpop.permute.xlu0 %589
    %595 = vrot.lane.b32.xlu0 %v553, 24
    %v596 = vpop.permute.xlu0 %595
    %597 = vrot.lane.b32.xlu0 %v574, 24
    %v598 = vpop.permute.xlu0 %597
    %v601 = vsel %vm130, %v217, %v580
    %v602 = vsel %vm130, %v238, %v582
    %vm603 = vcmask 130048
    %v604 = vsel %vm603, %v601, %v588
    %v605 = vsel %vm603, %v602, %v590
    %vm606 = vcmask 195584
    %v607 = vsel %vm606, %v604, %v596
    %v608 = vsel %vm606, %v605, %v598
    %v609 = vld [vmem:[#allocation7 + $0x20] sm:$0xf]
    %v610 = vld [vmem:[#allocation7 + $0x24] sm:$0xf]
    %v611 = vld [vmem:[#allocation7 + $0x28] sm:$0xf]
    %v612 = vld [vmem:[#allocation7 + $0x2c] sm:$0xf]
    %v613 = vpack.c.bf16 %v608, %v607
    %v614 = vld [vmem:[#allocation8 + $0x2] sm:$0x1]
    %v615 = vperm.slane %v614, 0
    %v620 = vunpack.c.l.b16 %v609
    %v621 = vunpack.c.l.b16 %v610
    %v622 = vunpack.c.l.b16 %v611
    %v623 = vunpack.c.l.b16 %v612
    %v624 = vpack.c.b16 %v621, %v620
    %v625 = vpack.c.b16 %v623, %v622
    %v629 = vsel %vm105, %v613, 0
    %631 = vmatpush.bf16.msra.mxu0 0
    %632 = vmatpush.bf16.msra.mxu0 0
    %633 = vmatpush.bf16.msra.mxu0 0
    %634 = vmatpush.bf16.msra.mxu0 0
    %635 = vmatpush.bf16.msra.mxu0 0
    %636 = vmatpush.bf16.msra.mxu0 0
    %637 = vmatpush.bf16.msra.mxu0 %v625
    %638 = vmatpush.bf16.msra.mxu0 %v624
    %639 = vmatmul.bf16.gmra.mxu0 %v629
    %v640 = vpop.f32.mrf.mxu0
    %v641 = vadd.f32 %v615, %v640
    %v642 = vpop.f32.mrf.mxu0
    %v643 = vadd.f32 %v615, %v642
    %644 = vdwg.mxu0
    %v645 = vadd.f32 %v82, %v641
    %v646 = vadd.f32 %v83, %v643
    %v647 = vsel %vm105, %v645, 0.0
    %648 = vadd.xlane.f32.xlu0 %v647
    %v649 = vpop.xlane.xlu0 %648
    %v650 = vsel %vm105, %v646, 0.0
    %651 = vadd.xlane.f32.xlu0 %v650
    %v652 = vpop.xlane.xlu0 %651
    %v653 = vrcp.pop 32.0
    %v654 = vmul.f32 32.0, %v653
    %v655 = vsub.f32 1.0, %v654
    %v656 = vmul.f32 %v653, %v655
    %v657 = vadd.f32 %v653, %v656
    %vm658 = vweird.f32 %v653
    %v659 = vsel %vm658, %v653, %v657
    %v660 = vmul.f32 %v649, %v659
    %v661 = vmul.f32 %v652, %v659
    %v662 = vsub.f32 %v645, %v660
    %v663 = vsub.f32 %v646, %v661
    %v664 = vmul.f32 %v662, %v662
    %v665 = vmul.f32 %v663, %v663
    %v666 = vsel %vm105, %v664, 0.0
    %667 = vadd.xlane.f32.xlu0 %v666
    %v668 = vpop.xlane.xlu0 %667
    %v669 = vsel %vm105, %v665, 0.0
    %670 = vadd.xlane.f32.xlu0 %v669
    %v671 = vpop.xlane.xlu0 %670
    %v672 = vmul.f32 %v668, %v659
    %v673 = vmul.f32 %v671, %v659
    %v674 = vadd.f32 %v672, 1e-05
    %v675 = vadd.f32 %v673, 1e-05
    %v676 = vrsqrt.pop %v674
    %v677 = vmul.f32 %v676, %v674
    %v678 = vmul.f32 %v677, %v676
    %v679 = vmul.f32 0.5, %v678
    %v680 = vsub.f32 1.5, %v679
    %v681 = vmul.f32 %v676, %v680
    %vm682 = vweird.f32 %v674
    %vm683 = vweird.f32 %v676
    %vm684 = vmor %vm682, %vm683
    %v685 = vsel %vm684, %v676, %v681
    %v686 = vrsqrt.pop %v675
    %v687 = vmul.f32 %v686, %v675
    %v688 = vmul.f32 %v687, %v686
    %v689 = vmul.f32 0.5, %v688
    %v690 = vsub.f32 1.5, %v689
    %v691 = vmul.f32 %v686, %v690
    %vm692 = vweird.f32 %v675
    %vm693 = vweird.f32 %v686
    %vm694 = vmor %vm692, %vm693
    %v695 = vsel %vm694, %v686, %v691
    %v696 = vmul.f32 %v662, %v685
    %v697 = vmul.f32 %v663, %v695
    %v698 = vld [vmem:[#allocation8 + $0x6] sm:$0x1]
    %v699 = vperm.slane %v698, 0
    %v700 = vmul.f32 %v696, %v699
    %v701 = vmul.f32 %v697, %v699
    %v702 = vld [vmem:[#allocation8 + $0x9] sm:$0x1]
    %v703 = vperm.slane %v702, 0
    %v704 = vadd.f32 %v700, %v703
    %v705 = vadd.f32 %v701, %v703
    %v706 = vld [vmem:[#allocation7 + $0x10] sm:$0xf]
    %v707 = vld [vmem:[#allocation7 + $0x14] sm:$0xf]
    %v708 = vld [vmem:[#allocation7 + $0x18] sm:$0xf]
    %v709 = vld [vmem:[#allocation7 + $0x1c] sm:$0xf]
    %v710 = vpack.c.bf16 %v705, %v704
    %v711 = vld [vmem:[#allocation8 + $0x1] sm:$0x1]
    %v712 = vperm.slane %v711, 0
    %v717 = vunpack.c.l.b16 %v706
    %v718 = vunpack.c.l.b16 %v707
    %v719 = vunpack.c.l.b16 %v708
    %v720 = vunpack.c.l.b16 %v709
    %v721 = vpack.c.b16 %v718, %v717
    %v722 = vpack.c.b16 %v720, %v719
    %v726 = vsel %vm105, %v710, 0
    %728 = vmatpush.bf16.msra.mxu0 0
    %729 = vmatpush.bf16.msra.mxu0 0
    %730 = vmatpush.bf16.msra.mxu0 0
    %731 = vmatpush.bf16.msra.mxu0 0
    %732 = vmatpush.bf16.msra.mxu0 0
    %733 = vmatpush.bf16.msra.mxu0 0
    %734 = vmatpush.bf16.msra.mxu0 %v722
    %735 = vmatpush.bf16.msra.mxu0 %v721
    %736 = vmatmul.bf16.gmra.mxu0 %v726
    %v737 = vpop.f32.mrf.mxu0
    %v738 = vadd.f32 %v712, %v737
    %v739 = vpop.f32.mrf.mxu0
    %v740 = vadd.f32 %v712, %v739
    %741 = vdwg.mxu0
    %v742 = vpack.c.bf16 %v85, %v84
    %743 = vrot.lane.b32.xlu0 %v721, 96
    %v744 = vpop.permute.xlu0 %743
    %745 = vrot.lane.b32.xlu0 %v722, 96
    %v746 = vpop.permute.xlu0 %745
    %750 = vrot.lane.b32.xlu0 %v712, 96
    %v751 = vpop.permute.xlu0 %750
    %v754 = vsel %vm105, %v742, 0
    %756 = vmatpush.bf16.msra.mxu0 0
    %757 = vmatpush.bf16.msra.mxu0 0
    %758 = vmatpush.bf16.msra.mxu0 0
    %759 = vmatpush.bf16.msra.mxu0 0
    %760 = vmatpush.bf16.msra.mxu0 0
    %761 = vmatpush.bf16.msra.mxu0 0
    %762 = vmatpush.bf16.msra.mxu0 %v746
    %763 = vmatpush.bf16.msra.mxu0 %v744
    %764 = vmatmul.bf16.gmra.mxu0 %v754
    %v765 = vpop.f32.mrf.mxu0
    %v766 = vadd.f32 %v751, %v765
    %v767 = vpop.f32.mrf.mxu0
    %v768 = vadd.f32 %v751, %v767
    %769 = vdwg.mxu0
    %v770 = vpack.c.bf16 %v738, %v738
    %v771 = vpack.c.bf16 %v740, %v740
    %v772 = vpack.c.bf16 %v766, %v766
    %v773 = vpack.c.bf16 %v768, %v768
    %v775 = vsel %vm130, %v770, 0
    %v778 = vsel %vm130, %v772, 0
    %780 = vmatpush.bf16.xpose.msra.mxu0 0
    %781 = vmatpush.bf16.xpose.msra.mxu0 0
    %782 = vmatpush.bf16.xpose.msra.mxu0 0
    %783 = vmatpush.bf16.xpose.msra.mxu0 0
    %784 = vmatpush.bf16.xpose.msra.mxu0 0
    %785 = vmatpush.bf16.xpose.msra.mxu0 0
    %786 = vmatpush.bf16.xpose.msra.mxu0 0
    %787 = vmatpush.bf16.xpose.msra.mxu0 %v778
    %788 = vmatmul.bf16.gmra.mxu0 %v775
    %v789 = vpop.f32.mrf.mxu0
    %v790 = vadd.f32 0.0, %v789
    %v791 = vpop.f32.mrf.mxu0
    %792 = vdwg.mxu0
    %v794 = vsel %vm130, %v771, 0
    %v797 = vsel %vm130, %v773, 0
    %799 = vmatpush.bf16.xpose.msra.mxu0 0
    %800 = vmatpush.bf16.xpose.msra.mxu0 0
    %801 = vmatpush.bf16.xpose.msra.mxu0 0
    %802 = vmatpush.bf16.xpose.msra.mxu0 0
    %803 = vmatpush.bf16.xpose.msra.mxu0 0
    %804 = vmatpush.bf16.xpose.msra.mxu0 0
    %805 = vmatpush.bf16.xpose.msra.mxu0 0
    %806 = vmatpush.bf16.xpose.msra.mxu0 %v797
    %807 = vmatmul.bf16.gmra.mxu0 %v794
    %v808 = vpop.f32.mrf.mxu0
    %v809 = vadd.f32 0.0, %v808
    %v810 = vpop.f32.mrf.mxu0
    %811 = vdwg.mxu0
    %v812 = vsel %vm130, %v790, -inf
    %813 = vmax.xlane.f32.xlu0 %v812
    %v814 = vpop.xlane.xlu0 %813
    %v815 = vsel %vm130, %v809, -inf
    %816 = vmax.xlane.f32.xlu0 %v815
    %v817 = vpop.xlane.xlu0 %816
    %v818 = vsub.f32 %v790, %v814
    %v819 = vsub.f32 %v809, %v817
    %v820 = vmul.f32 %v818, 1.442695
    %v821 = vpow.pop %v820
    %v822 = vmul.f32 %v819, 1.442695
    %v823 = vpow.pop %v822
    %v824 = vsel %vm130, %v821, 0.0
    %825 = vadd.xlane.f32.xlu0 %v824
    %v826 = vpop.xlane.xlu0 %825
    %v827 = vsel %vm130, %v823, 0.0
    %828 = vadd.xlane.f32.xlu0 %v827
    %v829 = vpop.xlane.xlu0 %828
    %v830 = vrcp.pop %v826
    %v831 = vrcp.pop %v829
    %v832 = vmul.f32 %v821, %v830
    %v833 = vmul.f32 %v823, %v831
    %v834 = vpack.c.bf16 %v832, %v832
    %v835 = vpack.c.bf16 %v833, %v833
    %v837 = vunpack.c.l.b16 %v772
    %v838 = vpack.c.b16 %v837, %v837
    %839 = vrot.lane.b32.xlu0 %v838, 96
    %v840 = vpop.permute.xlu0 %839
    %v842 = vsel %vm130, %v834, 0
    %v845 = vsel %vm203, %v840, 0
    %847 = vmatpush.bf16.msra.mxu0 0
    %848 = vmatpush.bf16.msra.mxu0 0
    %849 = vmatpush.bf16.msra.mxu0 0
    %850 = vmatpush.bf16.msra.mxu0 0
    %851 = vmatpush.bf16.msra.mxu0 0
    %852 = vmatpush.bf16.msra.mxu0 0
    %853 = vmatpush.bf16.msra.mxu0 0
    %854 = vmatpush.bf16.msra.mxu0 %v845
    %855 = vmatmul.bf16.gmra.mxu0 %v842
    %v856 = vpop.f32.mrf.mxu0
    %v857 = vadd.f32 0.0, %v856
    %v858 = vpop.f32.mrf.mxu0
    %859 = vdwg.mxu0
    %v861 = vunpack.c.l.b16 %v773
    %v862 = vpack.c.b16 %v861, %v861
    %863 = vrot.lane.b32.xlu0 %v862, 96
    %v864 = vpop.permute.xlu0 %863
    %v866 = vsel %vm130, %v835, 0
    %v869 = vsel %vm203, %v864, 0
    %871 = vmatpush.bf16.msra.mxu0 0
    %872 = vmatpush.bf16.msra.mxu0 0
    %873 = vmatpush.bf16.msra.mxu0 0
    %874 = vmatpush.bf16.msra.mxu0 0
    %875 = vmatpush.bf16.msra.mxu0 0
    %876 = vmatpush.bf16.msra.mxu0 0
    %877 = vmatpush.bf16.msra.mxu0 0
    %878 = vmatpush.bf16.msra.mxu0 %v869
    %879 = vmatmul.bf16.gmra.mxu0 %v866
    %v880 = vpop.f32.mrf.mxu0
    %v881 = vadd.f32 0.0, %v880
    %v882 = vpop.f32.mrf.mxu0
    %883 = vdwg.mxu0
    %v885 = vunpack.c.l.b16 %v770
    %v886 = vpack.c.b16 %v885, %v885
    %887 = vrot.lane.b32.xlu0 %v886, 120
    %v888 = vpop.permute.xlu0 %887
    %889 = vrot.lane.b32.xlu0 %v838, 120
    %v890 = vpop.permute.xlu0 %889
    %v892 = vsel %vm130, %v888, 0
    %v895 = vsel %vm130, %v890, 0
    %897 = vmatpush.bf16.xpose.msra.mxu0 0
    %898 = vmatpush.bf16.xpose.msra.mxu0 0
    %899 = vmatpush.bf16.xpose.msra.mxu0 0
    %900 = vmatpush.bf16.xpose.msra.mxu0 0
    %901 = vmatpush.bf16.xpose.msra.mxu0 0
    %902 = vmatpush.bf16.xpose.msra.mxu0 0
    %903 = vmatpush.bf16.xpose.msra.mxu0 0
    %904 = vmatpush.bf16.xpose.msra.mxu0 %v895
    %905 = vmatmul.bf16.gmra.mxu0 %v892
    %v906 = vpop.f32.mrf.mxu0
    %v907 = vadd.f32 0.0, %v906
    %v908 = vpop.f32.mrf.mxu0
    %909 = vdwg.mxu0
    %v911 = vunpack.c.l.b16 %v771
    %v912 = vpack.c.b16 %v911, %v911
    %913 = vrot.lane.b32.xlu0 %v912, 120
    %v914 = vpop.permute.xlu0 %913
    %915 = vrot.lane.b32.xlu0 %v862, 120
    %v916 = vpop.permute.xlu0 %915
    %v918 = vsel %vm130, %v914, 0
    %v921 = vsel %vm130, %v916, 0
    %923 = vmatpush.bf16.xpose.msra.mxu0 0
    %924 = vmatpush.bf16.xpose.msra.mxu0 0
    %925 = vmatpush.bf16.xpose.msra.mxu0 0
    %926 = vmatpush.bf16.xpose.msra.mxu0 0
    %927 = vmatpush.bf16.xpose.msra.mxu0 0
    %928 = vmatpush.bf16.xpose.msra.mxu0 0
    %929 = vmatpush.bf16.xpose.msra.mxu0 0
    %930 = vmatpush.bf16.xpose.msra.mxu0 %v921
    %931 = vmatmul.bf16.gmra.mxu0 %v918
    %v932 = vpop.f32.mrf.mxu0
    %v933 = vadd.f32 0.0, %v932
    %v934 = vpop.f32.mrf.mxu0
    %935 = vdwg.mxu0
    %v936 = vsel %vm130, %v907, -inf
    %937 = vmax.xlane.f32.xlu0 %v936
    %v938 = vpop.xlane.xlu0 %937
    %v939 = vsel %vm130, %v933, -inf
    %940 = vmax.xlane.f32.xlu0 %v939
    %v941 = vpop.xlane.xlu0 %940
    %v942 = vsub.f32 %v907, %v938
    %v943 = vsub.f32 %v933, %v941
    %v944 = vmul.f32 %v942, 1.442695
    %v945 = vpow.pop %v944
    %v946 = vmul.f32 %v943, 1.442695
    %v947 = vpow.pop %v946
    %v948 = vsel %vm130, %v945, 0.0
    %949 = vadd.xlane.f32.xlu0 %v948
    %v950 = vpop.xlane.xlu0 %949
    %v951 = vsel %vm130, %v947, 0.0
    %952 = vadd.xlane.f32.xlu0 %v951
    %v953 = vpop.xlane.xlu0 %952
    %v954 = vrcp.pop %v950
    %v955 = vrcp.pop %v953
    %v956 = vmul.f32 %v945, %v954
    %v957 = vmul.f32 %v947, %v955
    %v958 = vpack.c.bf16 %v956, %v956
    %v959 = vpack.c.bf16 %v957, %v957
    %960 = vrot.lane.b32.xlu0 %v838, 88
    %v961 = vpop.permute.xlu0 %960
    %v963 = vsel %vm130, %v958, 0
    %v966 = vsel %vm203, %v961, 0
    %968 = vmatpush.bf16.msra.mxu0 0
    %969 = vmatpush.bf16.msra.mxu0 0
    %970 = vmatpush.bf16.msra.mxu0 0
    %971 = vmatpush.bf16.msra.mxu0 0
    %972 = vmatpush.bf16.msra.mxu0 0
    %973 = vmatpush.bf16.msra.mxu0 0
    %974 = vmatpush.bf16.msra.mxu0 0
    %975 = vmatpush.bf16.msra.mxu0 %v966
    %976 = vmatmul.bf16.gmra.mxu0 %v963
    %v977 = vpop.f32.mrf.mxu0
    %v978 = vadd.f32 0.0, %v977
    %v979 = vpop.f32.mrf.mxu0
    %980 = vdwg.mxu0
    %981 = vrot.lane.b32.xlu0 %v862, 88
    %v982 = vpop.permute.xlu0 %981
    %v984 = vsel %vm130, %v959, 0
    %v987 = vsel %vm203, %v982, 0
    %989 = vmatpush.bf16.msra.mxu0 0
    %990 = vmatpush.bf16.msra.mxu0 0
    %991 = vmatpush.bf16.msra.mxu0 0
    %992 = vmatpush.bf16.msra.mxu0 0
    %993 = vmatpush.bf16.msra.mxu0 0
    %994 = vmatpush.bf16.msra.mxu0 0
    %995 = vmatpush.bf16.msra.mxu0 0
    %996 = vmatpush.bf16.msra.mxu0 %v987
    %997 = vmatmul.bf16.gmra.mxu0 %v984
    %v998 = vpop.f32.mrf.mxu0
    %v999 = vadd.f32 0.0, %v998
    %v1000 = vpop.f32.mrf.mxu0
    %1001 = vdwg.mxu0
    %1002 = vrot.lane.b32.xlu0 %v886, 112
    %v1003 = vpop.permute.xlu0 %1002
    %1004 = vrot.lane.b32.xlu0 %v838, 112
    %v1005 = vpop.permute.xlu0 %1004
    %v1007 = vsel %vm130, %v1003, 0
    %v1010 = vsel %vm130, %v1005, 0
    %1012 = vmatpush.bf16.xpose.msra.mxu0 0
    %1013 = vmatpush.bf16.xpose.msra.mxu0 0
    %1014 = vmatpush.bf16.xpose.msra.mxu0 0
    %1015 = vmatpush.bf16.xpose.msra.mxu0 0
    %1016 = vmatpush.bf16.xpose.msra.mxu0 0
    %1017 = vmatpush.bf16.xpose.msra.mxu0 0
    %1018 = vmatpush.bf16.xpose.msra.mxu0 0
    %1019 = vmatpush.bf16.xpose.msra.mxu0 %v1010
    %1020 = vmatmul.bf16.gmra.mxu0 %v1007
    %v1021 = vpop.f32.mrf.mxu0
    %v1022 = vadd.f32 0.0, %v1021
    %v1023 = vpop.f32.mrf.mxu0
    %1024 = vdwg.mxu0
    %1025 = vrot.lane.b32.xlu0 %v912, 112
    %v1026 = vpop.permute.xlu0 %1025
    %1027 = vrot.lane.b32.xlu0 %v862, 112
    %v1028 = vpop.permute.xlu0 %1027
    %v1030 = vsel %vm130, %v1026, 0
    %v1033 = vsel %vm130, %v1028, 0
    %1035 = vmatpush.bf16.xpose.msra.mxu0 0
    %1036 = vmatpush.bf16.xpose.msra.mxu0 0
    %1037 = vmatpush.bf16.xpose.msra.mxu0 0
    %1038 = vmatpush.bf16.xpose.msra.mxu0 0
    %1039 = vmatpush.bf16.xpose.msra.mxu0 0
    %1040 = vmatpush.bf16.xpose.msra.mxu0 0
    %1041 = vmatpush.bf16.xpose.msra.mxu0 0
    %1042 = vmatpush.bf16.xpose.msra.mxu0 %v1033
    %1043 = vmatmul.bf16.gmra.mxu0 %v1030
    %v1044 = vpop.f32.mrf.mxu0
    %v1045 = vadd.f32 0.0, %v1044
    %v1046 = vpop.f32.mrf.mxu0
    %1047 = vdwg.mxu0
    %v1048 = vsel %vm130, %v1022, -inf
    %1049 = vmax.xlane.f32.xlu0 %v1048
    %v1050 = vpop.xlane.xlu0 %1049
    %v1051 = vsel %vm130, %v1045, -inf
    %1052 = vmax.xlane.f32.xlu0 %v1051
    %v1053 = vpop.xlane.xlu0 %1052
    %v1054 = vsub.f32 %v1022, %v1050
    %v1055 = vsub.f32 %v1045, %v1053
    %v1056 = vmul.f32 %v1054, 1.442695
    %v1057 = vpow.pop %v1056
    %v1058 = vmul.f32 %v1055, 1.442695
    %v1059 = vpow.pop %v1058
    %v1060 = vsel %vm130, %v1057, 0.0
    %1061 = vadd.xlane.f32.xlu0 %v1060
    %v1062 = vpop.xlane.xlu0 %1061
    %v1063 = vsel %vm130, %v1059, 0.0
    %1064 = vadd.xlane.f32.xlu0 %v1063
    %v1065 = vpop.xlane.xlu0 %1064
    %v1066 = vrcp.pop %v1062
    %v1067 = vrcp.pop %v1065
    %v1068 = vmul.f32 %v1057, %v1066
    %v1069 = vmul.f32 %v1059, %v1067
    %v1070 = vpack.c.bf16 %v1068, %v1068
    %v1071 = vpack.c.bf16 %v1069, %v1069
    %1072 = vrot.lane.b32.xlu0 %v838, 80
    %v1073 = vpop.permute.xlu0 %1072
    %v1075 = vsel %vm130, %v1070, 0
    %v1078 = vsel %vm203, %v1073, 0
    %1080 = vmatpush.bf16.msra.mxu0 0
    %1081 = vmatpush.bf16.msra.mxu0 0
    %1082 = vmatpush.bf16.msra.mxu0 0
    %1083 = vmatpush.bf16.msra.mxu0 0
    %1084 = vmatpush.bf16.msra.mxu0 0
    %1085 = vmatpush.bf16.msra.mxu0 0
    %1086 = vmatpush.bf16.msra.mxu0 0
    %1087 = vmatpush.bf16.msra.mxu0 %v1078
    %1088 = vmatmul.bf16.gmra.mxu0 %v1075
    %v1089 = vpop.f32.mrf.mxu0
    %v1090 = vadd.f32 0.0, %v1089
    %v1091 = vpop.f32.mrf.mxu0
    %1092 = vdwg.mxu0
    %1093 = vrot.lane.b32.xlu0 %v862, 80
    %v1094 = vpop.permute.xlu0 %1093
    %v1096 = vsel %vm130, %v1071, 0
    %v1099 = vsel %vm203, %v1094, 0
    %1101 = vmatpush.bf16.msra.mxu0 0
    %1102 = vmatpush.bf16.msra.mxu0 0
    %1103 = vmatpush.bf16.msra.mxu0 0
    %1104 = vmatpush.bf16.msra.mxu0 0
    %1105 = vmatpush.bf16.msra.mxu0 0
    %1106 = vmatpush.bf16.msra.mxu0 0
    %1107 = vmatpush.bf16.msra.mxu0 0
    %1108 = vmatpush.bf16.msra.mxu0 %v1099
    %1109 = vmatmul.bf16.gmra.mxu0 %v1096
    %v1110 = vpop.f32.mrf.mxu0
    %v1111 = vadd.f32 0.0, %v1110
    %v1112 = vpop.f32.mrf.mxu0
    %1113 = vdwg.mxu0
    %1114 = vrot.lane.b32.xlu0 %v886, 104
    %v1115 = vpop.permute.xlu0 %1114
    %1116 = vrot.lane.b32.xlu0 %v838, 104
    %v1117 = vpop.permute.xlu0 %1116
    %v1119 = vsel %vm130, %v1115, 0
    %v1122 = vsel %vm130, %v1117, 0
    %1124 = vmatpush.bf16.xpose.msra.mxu0 0
    %1125 = vmatpush.bf16.xpose.msra.mxu0 0
    %1126 = vmatpush.bf16.xpose.msra.mxu0 0
    %1127 = vmatpush.bf16.xpose.msra.mxu0 0
    %1128 = vmatpush.bf16.xpose.msra.mxu0 0
    %1129 = vmatpush.bf16.xpose.msra.mxu0 0
    %1130 = vmatpush.bf16.xpose.msra.mxu0 0
    %1131 = vmatpush.bf16.xpose.msra.mxu0 %v1122
    %1132 = vmatmul.bf16.gmra.mxu0 %v1119
    %v1133 = vpop.f32.mrf.mxu0
    %v1134 = vadd.f32 0.0, %v1133
    %v1135 = vpop.f32.mrf.mxu0
    %1136 = vdwg.mxu0
    %1137 = vrot.lane.b32.xlu0 %v912, 104
    %v1138 = vpop.permute.xlu0 %1137
    %1139 = vrot.lane.b32.xlu0 %v862, 104
    %v1140 = vpop.permute.xlu0 %1139
    %v1142 = vsel %vm130, %v1138, 0
    %v1145 = vsel %vm130, %v1140, 0
    %1147 = vmatpush.bf16.xpose.msra.mxu0 0
    %1148 = vmatpush.bf16.xpose.msra.mxu0 0
    %1149 = vmatpush.bf16.xpose.msra.mxu0 0
    %1150 = vmatpush.bf16.xpose.msra.mxu0 0
    %1151 = vmatpush.bf16.xpose.msra.mxu0 0
    %1152 = vmatpush.bf16.xpose.msra.mxu0 0
    %1153 = vmatpush.bf16.xpose.msra.mxu0 0
    %1154 = vmatpush.bf16.xpose.msra.mxu0 %v1145
    %1155 = vmatmul.bf16.gmra.mxu0 %v1142
    %v1156 = vpop.f32.mrf.mxu0
    %v1157 = vadd.f32 0.0, %v1156
    %v1158 = vpop.f32.mrf.mxu0
    %1159 = vdwg.mxu0
    %v1160 = vsel %vm130, %v1134, -inf
    %1161 = vmax.xlane.f32.xlu0 %v1160
    %v1162 = vpop.xlane.xlu0 %1161
    %v1163 = vsel %vm130, %v1157, -inf
    %1164 = vmax.xlane.f32.xlu0 %v1163
    %v1165 = vpop.xlane.xlu0 %1164
    %v1166 = vsub.f32 %v1134, %v1162
    %v1167 = vsub.f32 %v1157, %v1165
    %v1168 = vmul.f32 %v1166, 1.442695
    %v1169 = vpow.pop %v1168
    %v1170 = vmul.f32 %v1167, 1.442695
    %v1171 = vpow.pop %v1170
    %v1172 = vsel %vm130, %v1169, 0.0
    %1173 = vadd.xlane.f32.xlu0 %v1172
    %v1174 = vpop.xlane.xlu0 %1173
    %v1175 = vsel %vm130, %v1171, 0.0
    %1176 = vadd.xlane.f32.xlu0 %v1175
    %v1177 = vpop.xlane.xlu0 %1176
    %v1178 = vrcp.pop %v1174
    %v1179 = vrcp.pop %v1177
    %v1180 = vmul.f32 %v1169, %v1178
    %v1181 = vmul.f32 %v1171, %v1179
    %v1182 = vpack.c.bf16 %v1180, %v1180
    %v1183 = vpack.c.bf16 %v1181, %v1181
    %1184 = vrot.lane.b32.xlu0 %v838, 72
    %v1185 = vpop.permute.xlu0 %1184
    %v1187 = vsel %vm130, %v1182, 0
    %v1190 = vsel %vm203, %v1185, 0
    %1192 = vmatpush.bf16.msra.mxu0 0
    %1193 = vmatpush.bf16.msra.mxu0 0
    %1194 = vmatpush.bf16.msra.mxu0 0
    %1195 = vmatpush.bf16.msra.mxu0 0
    %1196 = vmatpush.bf16.msra.mxu0 0
    %1197 = vmatpush.bf16.msra.mxu0 0
    %1198 = vmatpush.bf16.msra.mxu0 0
    %1199 = vmatpush.bf16.msra.mxu0 %v1190
    %1200 = vmatmul.bf16.gmra.mxu0 %v1187
    %v1201 = vpop.f32.mrf.mxu0
    %v1202 = vadd.f32 0.0, %v1201
    %v1203 = vpop.f32.mrf.mxu0
    %1204 = vdwg.mxu0
    %1205 = vrot.lane.b32.xlu0 %v862, 72
    %v1206 = vpop.permute.xlu0 %1205
    %v1208 = vsel %vm130, %v1183, 0
    %v1211 = vsel %vm203, %v1206, 0
    %1213 = vmatpush.bf16.msra.mxu0 0
    %1214 = vmatpush.bf16.msra.mxu0 0
    %1215 = vmatpush.bf16.msra.mxu0 0
    %1216 = vmatpush.bf16.msra.mxu0 0
    %1217 = vmatpush.bf16.msra.mxu0 0
    %1218 = vmatpush.bf16.msra.mxu0 0
    %1219 = vmatpush.bf16.msra.mxu0 0
    %1220 = vmatpush.bf16.msra.mxu0 %v1211
    %1221 = vmatmul.bf16.gmra.mxu0 %v1208
    %v1222 = vpop.f32.mrf.mxu0
    %v1223 = vadd.f32 0.0, %v1222
    %v1224 = vpop.f32.mrf.mxu0
    %1225 = vdwg.mxu0
    %1228 = vrot.lane.b32.xlu0 %v978, 8
    %v1229 = vpop.permute.xlu0 %1228
    %1230 = vrot.lane.b32.xlu0 %v999, 8
    %v1231 = vpop.permute.xlu0 %1230
    %1236 = vrot.lane.b32.xlu0 %v1090, 16
    %v1237 = vpop.permute.xlu0 %1236
    %1238 = vrot.lane.b32.xlu0 %v1111, 16
    %v1239 = vpop.permute.xlu0 %1238
    %1244 = vrot.lane.b32.xlu0 %v1202, 24
    %v1245 = vpop.permute.xlu0 %1244
    %1246 = vrot.lane.b32.xlu0 %v1223, 24
    %v1247 = vpop.permute.xlu0 %1246
    %v1250 = vsel %vm130, %v857, %v1229
    %v1251 = vsel %vm130, %v881, %v1231
    %v1252 = vsel %vm603, %v1250, %v1237
    %v1253 = vsel %vm603, %v1251, %v1239
    %v1254 = vsel %vm606, %v1252, %v1245
    %v1255 = vsel %vm606, %v1253, %v1247
    %v1256 = vld [vmem:[#allocation7 + $0x30] sm:$0xf]
    %v1257 = vld [vmem:[#allocation7 + $0x34] sm:$0xf]
    %v1258 = vld [vmem:[#allocation7 + $0x38] sm:$0xf]
    %v1259 = vld [vmem:[#allocation7 + $0x3c] sm:$0xf]
    %v1260 = vpack.c.bf16 %v1255, %v1254
    %v1261 = vld [vmem:[#allocation8 + $0x3] sm:$0x1]
    %v1262 = vperm.slane %v1261, 0
    %v1267 = vunpack.c.l.b16 %v1256
    %v1268 = vunpack.c.l.b16 %v1257
    %v1269 = vunpack.c.l.b16 %v1258
    %v1270 = vunpack.c.l.b16 %v1259
    %v1271 = vpack.c.b16 %v1268, %v1267
    %v1272 = vpack.c.b16 %v1270, %v1269
    %v1276 = vsel %vm105, %v1260, 0
    %1278 = vmatpush.bf16.msra.mxu0 0
    %1279 = vmatpush.bf16.msra.mxu0 0
    %1280 = vmatpush.bf16.msra.mxu0 0
    %1281 = vmatpush.bf16.msra.mxu0 0
    %1282 = vmatpush.bf16.msra.mxu0 0
    %1283 = vmatpush.bf16.msra.mxu0 0
    %1284 = vmatpush.bf16.msra.mxu0 %v1272
    %1285 = vmatpush.bf16.msra.mxu0 %v1271
    %1286 = vmatmul.bf16.gmra.mxu0 %v1276
    %v1287 = vpop.f32.mrf.mxu0
    %v1288 = vadd.f32 %v1262, %v1287
    %v1289 = vpop.f32.mrf.mxu0
    %v1290 = vadd.f32 %v1262, %v1289
    %1291 = vdwg.mxu0
    %v1292 = vadd.f32 %v704, %v1288
    %v1293 = vadd.f32 %v705, %v1290
    %v1294 = vsel %vm105, %v1292, 0.0
    %1295 = vadd.xlane.f32.xlu0 %v1294
    %v1296 = vpop.xlane.xlu0 %1295
    %v1297 = vsel %vm105, %v1293, 0.0
    %1298 = vadd.xlane.f32.xlu0 %v1297
    %v1299 = vpop.xlane.xlu0 %1298
    %v1300 = vmul.f32 %v1296, %v659
    %v1301 = vmul.f32 %v1299, %v659
    %v1302 = vsub.f32 %v1292, %v1300
    %v1303 = vsub.f32 %v1293, %v1301
    %v1304 = vmul.f32 %v1302, %v1302
    %v1305 = vmul.f32 %v1303, %v1303
    %v1306 = vsel %vm105, %v1304, 0.0
    %1307 = vadd.xlane.f32.xlu0 %v1306
    %v1308 = vpop.xlane.xlu0 %1307
    %v1309 = vsel %vm105, %v1305, 0.0
    %1310 = vadd.xlane.f32.xlu0 %v1309
    %v1311 = vpop.xlane.xlu0 %1310
    %v1312 = vmul.f32 %v1308, %v659
    %v1313 = vmul.f32 %v1311, %v659
    %v1314 = vadd.f32 %v1312, 1e-05
    %v1315 = vadd.f32 %v1313, 1e-05
    %v1316 = vrsqrt.pop %v1314
    %v1317 = vmul.f32 %v1316, %v1314
    %v1318 = vmul.f32 %v1317, %v1316
    %v1319 = vmul.f32 0.5, %v1318
    %v1320 = vsub.f32 1.5, %v1319
    %v1321 = vmul.f32 %v1316, %v1320
    %vm1322 = vweird.f32 %v1314
    %vm1323 = vweird.f32 %v1316
    %vm1324 = vmor %vm1322, %vm1323
    %v1325 = vsel %vm1324, %v1316, %v1321
    %v1326 = vrsqrt.pop %v1315
    %v1327 = vmul.f32 %v1326, %v1315
    %v1328 = vmul.f32 %v1327, %v1326
    %v1329 = vmul.f32 0.5, %v1328
    %v1330 = vsub.f32 1.5, %v1329
    %v1331 = vmul.f32 %v1326, %v1330
    %vm1332 = vweird.f32 %v1315
    %vm1333 = vweird.f32 %v1326
    %vm1334 = vmor %vm1332, %vm1333
    %v1335 = vsel %vm1334, %v1326, %v1331
    %v1336 = vmul.f32 %v1302, %v1325
    %v1337 = vmul.f32 %v1303, %v1335
    %v1338 = vld [vmem:[#allocation8 + $0x7] sm:$0x1]
    %v1339 = vperm.slane %v1338, 0
    %v1340 = vmul.f32 %v1336, %v1339
    %v1341 = vmul.f32 %v1337, %v1339
    %v1342 = vld [vmem:[#allocation8 + $0xa] sm:$0x1]
    %v1343 = vperm.slane %v1342, 0
    %v1344 = vadd.f32 %v1340, %v1343
    %v1345 = vadd.f32 %v1341, %v1343
    %v1346 = vld [vmem:[#allocation7 + $0x40] sm:$0xf]
    %v1347 = vld [vmem:[#allocation7 + $0x44] sm:$0xf]
    %v1348 = vld [vmem:[#allocation7 + $0x48] sm:$0xf]
    %v1349 = vld [vmem:[#allocation7 + $0x4c] sm:$0xf]
    %v1350 = vpack.c.bf16 %v1345, %v1344
    %v1351 = vld [vmem:[#allocation8 + $0x4] sm:$0x1]
    %v1352 = vperm.slane %v1351, 0
    %v1357 = vunpack.c.l.b16 %v1346
    %v1358 = vunpack.c.l.b16 %v1347
    %v1359 = vunpack.c.l.b16 %v1348
    %v1360 = vunpack.c.l.b16 %v1349
    %v1361 = vpack.c.b16 %v1358, %v1357
    %v1362 = vpack.c.b16 %v1360, %v1359
    %v1366 = vsel %vm105, %v1350, 0
    %1368 = vmatpush.bf16.msra.mxu0 0
    %1369 = vmatpush.bf16.msra.mxu0 0
    %1370 = vmatpush.bf16.msra.mxu0 0
    %1371 = vmatpush.bf16.msra.mxu0 0
    %1372 = vmatpush.bf16.msra.mxu0 0
    %1373 = vmatpush.bf16.msra.mxu0 0
    %1374 = vmatpush.bf16.msra.mxu0 %v1362
    %1375 = vmatpush.bf16.msra.mxu0 %v1361
    %1376 = vmatmul.bf16.gmra.mxu0 %v1366
    %v1377 = vpop.f32.mrf.mxu0
    %v1378 = vadd.f32 %v1352, %v1377
    %v1379 = vpop.f32.mrf.mxu0
    %v1380 = vadd.f32 %v1352, %v1379
    %1381 = vdwg.mxu0
    %v1382 = vmax.f32 %v1378, 0.0
    %v1383 = vmax.f32 %v1380, 0.0
    %v1384 = vld [vmem:[#allocation7 + $0x50] sm:$0xf]
    %v1385 = vld [vmem:[#allocation7 + $0x54] sm:$0xf]
    %v1386 = vld [vmem:[#allocation7 + $0x58] sm:$0xf]
    %v1387 = vld [vmem:[#allocation7 + $0x5c] sm:$0xf]
    %v1388 = vld [vmem:[#allocation7 + $0x60] sm:$0xf]
    %v1389 = vld [vmem:[#allocation7 + $0x64] sm:$0xf]
    %v1390 = vld [vmem:[#allocation7 + $0x68] sm:$0xf]
    %v1391 = vld [vmem:[#allocation7 + $0x6c] sm:$0xf]
    %v1392 = vpack.c.bf16 %v1383, %v1382
    %v1393 = vld [vmem:[#allocation8 + $0x5] sm:$0x1]
    %v1394 = vperm.slane %v1393, 0
    %v1403 = vunpack.c.l.b16 %v1384
    %v1404 = vunpack.c.l.b16 %v1385
    %v1405 = vunpack.c.l.b16 %v1386
    %v1406 = vunpack.c.l.b16 %v1387
    %v1407 = vunpack.c.l.b16 %v1388
    %v1408 = vunpack.c.l.b16 %v1389
    %v1409 = vunpack.c.l.b16 %v1390
    %v1410 = vunpack.c.l.b16 %v1391
    %v1411 = vpack.c.b16 %v1404, %v1403
    %v1412 = vpack.c.b16 %v1406, %v1405
    %v1413 = vpack.c.b16 %v1408, %v1407
    %v1414 = vpack.c.b16 %v1410, %v1409
    %vm1419 = vcmask 523264
    %v1421 = vsel %vm1419, %v1392, 0
    %1423 = vmatpush.bf16.msra.mxu0 0
    %1424 = vmatpush.bf16.msra.mxu0 0
    %1425 = vmatpush.bf16.msra.mxu0 0
    %1426 = vmatpush.bf16.msra.mxu0 0
    %1427 = vmatpush.bf16.msra.mxu0 %v1414
    %1428 = vmatpush.bf16.msra.mxu0 %v1413
    %1429 = vmatpush.bf16.msra.mxu0 %v1412
    %1430 = vmatpush.bf16.msra.mxu0 %v1411
    %1431 = vmatmul.bf16.gmra.mxu0 %v1421
    %v1432 = vpop.f32.mrf.mxu0
    %v1433 = vadd.f32 %v1394, %v1432
    %v1434 = vpop.f32.mrf.mxu0
    %v1435 = vadd.f32 %v1394, %v1434
    %1436 = vdwg.mxu0
    %v1437 = vadd.f32 %v1344, %v1433
    %v1438 = vadd.f32 %v1345, %v1435
    %v1439 = vsel %vm105, %v1437, 0.0
    %1440 = vadd.xlane.f32.xlu0 %v1439
    %v1441 = vpop.xlane.xlu0 %1440
    %v1442 = vsel %vm105, %v1438, 0.0
    %1443 = vadd.xlane.f32.xlu0 %v1442
    %v1444 = vpop.xlane.xlu0 %1443
    %v1445 = vmul.f32 %v1441, %v659
    %v1446 = vmul.f32 %v1444, %v659
    %v1447 = vsub.f32 %v1437, %v1445
    %v1448 = vsub.f32 %v1438, %v1446
    %v1449 = vmul.f32 %v1447, %v1447
    %v1450 = vmul.f32 %v1448, %v1448
    %v1451 = vsel %vm105, %v1449, 0.0
    %1452 = vadd.xlane.f32.xlu0 %v1451
    %v1453 = vpop.xlane.xlu0 %1452
    %v1454 = vsel %vm105, %v1450, 0.0
    %1455 = vadd.xlane.f32.xlu0 %v1454
    %v1456 = vpop.xlane.xlu0 %1455
    %v1457 = vmul.f32 %v1453, %v659
    %v1458 = vmul.f32 %v1456, %v659
    %v1459 = vadd.f32 %v1457, 1e-05
    %v1460 = vadd.f32 %v1458, 1e-05
    %v1461 = vrsqrt.pop %v1459
    %v1462 = vmul.f32 %v1461, %v1459
    %v1463 = vmul.f32 %v1462, %v1461
    %v1464 = vmul.f32 0.5, %v1463
    %v1465 = vsub.f32 1.5, %v1464
    %v1466 = vmul.f32 %v1461, %v1465
    %vm1467 = vweird.f32 %v1459
    %vm1468 = vweird.f32 %v1461
    %vm1469 = vmor %vm1467, %vm1468
    %v1470 = vsel %vm1469, %v1461, %v1466
    %v1471 = vrsqrt.pop %v1460
    %v1472 = vmul.f32 %v1471, %v1460
    %v1473 = vmul.f32 %v1472, %v1471
    %v1474 = vmul.f32 0.5, %v1473
    %v1475 = vsub.f32 1.5, %v1474
    %v1476 = vmul.f32 %v1471, %v1475
    %vm1477 = vweird.f32 %v1460
    %vm1478 = vweird.f32 %v1471
    %vm1479 = vmor %vm1477, %vm1478
    %v1480 = vsel %vm1479, %v1471, %v1476
    %v1481 = vmul.f32 %v1447, %v1470
    %v1482 = vmul.f32 %v1448, %v1480
    %v1483 = vld [vmem:[#allocation8 + $0x8] sm:$0x1]
    %v1484 = vperm.slane %v1483, 0
    %v1485 = vmul.f32 %v1481, %v1484
    %v1486 = vmul.f32 %v1482, %v1484
    %v1487 = vld [vmem:[#allocation8 + $0xb] sm:$0x1]
    %v1488 = vperm.slane %v1487, 0
    %v1489 = vadd.f32 %v1485, %v1488
    %v1490 = vadd.f32 %v1486, %v1488
    %1491 = vst.msk [vmem:[#allocation10] sm:$0xff] %vm105, %v1489
    %1492 = vst.msk [vmem:[#allocation10 + $0x8] sm:$0xff] %vm105, %v1490
    // Predicated region
    $region34: #{decoder_layer.1} parent=1 // pred_check
      _
    $region35: #{decoder_layer.1} parent=1 // pred_check_branch
      %1494 = sbr.rel (0) target = $region37
    $region36: #{decoder_layer.1} parent=1 // pred_region
      %1496 = vsyncadd [#allocation4], 0
      %s1497 = sshll.u32 [#allocation10], 4
      %s1498 = int_to_ptr.vmem [resolvable:$true] %s1497
      %s1499 = sshll.u32 %s4, 4
      %s1500 = int_to_ptr.hbm [resolvable:$true] %s1499
      %1505 = dma.vmem_to_hbm [thread:$0]  %s1498, 256, %s1500, [#allocation4], 128, 128, 8
    $region37: #{decoder_layer.1} parent=1 // pred_fallthru
      _
    // Predicated region
    $region38: #{decoder_layer.1} parent=1 // pred_check
      _
    $region39: #{decoder_layer.1} parent=1 // pred_check_branch
      %1507 = sbr.rel (0) target = $region41
    $region40: #{decoder_layer.1} parent=1 // pred_region
      %1509 = dma.done [#allocation4], 256
    $region41: #{decoder_layer.1} parent=1 // pred_fallthru
      _
    %1510 = vsyncpa [#allocation3], 1
    %1511 = vsyncpa [#allocation6], 1
    %1512 = vsyncpa [#allocation9], 1
    %1513 = vsyncpa [#allocation4], 1

</llo_original>
